<compile_context>
chip_gen: v7x
topology: tpu7x:2x2x1
jax: 0.10.0
libtpu: 0.0.40
codegen_flags: <defaults>
</compile_context>

<pallas_src>
import functools

import jax
import jax.numpy as jnp
from jax import lax
from jax.experimental import pallas as pl
from jax.experimental.pallas import tpu as pltpu


def _round_up(x, m):
    return (x + m - 1) // m * m


def rbm_cdk_kernel(v_ref, w_ref, hb_ref, vb_ref, uh_ref, uv_ref, out_ref, *, cd_k):
    """CD-k Gibbs sampling for one RBM layer on one batch tile (all in VMEM).

    v_ref:   (TB, n_vis)            f32  visible input tile
    w_ref:   (n_hid_p, n_vis)       f32  weights (PyTorch layout, hidden zero-padded)
    hb_ref:  (1, n_hid_p)           f32  hidden bias (zero-padded)
    vb_ref:  (1, n_vis)             f32  visible bias
    uh_ref:  (cd_k+1, TB, n_hid_p)  f32  pre-drawn uniforms for hidden sampling
    uv_ref:  (cd_k,   TB, n_vis)    f32  pre-drawn uniforms for visible sampling
    out_ref: (TB, n_vis)            f32  final visible sample v_
    """
    v0 = v_ref[...]
    W = w_ref[...]
    W_bf = W.astype(jnp.bfloat16)          # hoisted once; reused by all chain matmuls
    h_bias = hb_ref[...]
    v_bias = vb_ref[...]

    def v_to_h_sample(v, W_mat, u):
        # v @ W.T  -> contract feature dims directly (no explicit transpose)
        pre = lax.dot_general(v, W_mat, (((1,), (1,)), ((), ())),
                              preferred_element_type=jnp.float32) + h_bias
        return (u < jax.nn.sigmoid(pre)).astype(jnp.float32)

    def h_to_v_sample(h, u):
        pre = jnp.dot(h.astype(jnp.bfloat16), W_bf,
                      preferred_element_type=jnp.float32) + v_bias
        return (u < jax.nn.sigmoid(pre)).astype(jnp.float32)

    # Initial v -> h in full f32 (input may be non-binary).
    h = v_to_h_sample(v0, W, uh_ref[0])

    # Fully unrolled CD-k chain (cd_k is a compile-time constant).
    v_last = v0
    for t in range(cd_k):
        v_last = h_to_v_sample(h, uv_ref[t])
        h = v_to_h_sample(v_last.astype(jnp.bfloat16), W_bf, uh_ref[t + 1])

    out_ref[...] = v_last


def dbm_forward_greedy(v, W0, h_bias0, v_bias0, key, cd_k=10, batch_tile=256):
    """DBM.forward with greedy=True, ith_layer=0: returns (v, v_)."""
    B, n_vis = v.shape
    n_hid = W0.shape[0]

    # --- pad hidden dim to a lane-dense multiple of 128 (zero rows contribute 0) ---
    n_hid_p = _round_up(n_hid, 128)
    W_p = jnp.zeros((n_hid_p, n_vis), jnp.float32).at[:n_hid].set(W0.astype(jnp.float32))
    hb_p = jnp.zeros((1, n_hid_p), jnp.float32).at[0, :n_hid].set(h_bias0.astype(jnp.float32))
    vb_p = v_bias0.astype(jnp.float32).reshape(1, n_vis)

    # --- batch tiling: rows are independent Gibbs chains ---
    tb = min(_round_up(B, 8), _round_up(batch_tile, 8))
    B_p = _round_up(B, tb)
    v_p = v.astype(jnp.float32)
    if B_p != B:
        v_p = jnp.pad(v_p, ((0, B_p - B), (0, 0)))

    # --- pre-drawn uniforms replace torch.bernoulli (statistically equivalent) ---
    k_h, k_v = jax.random.split(key)
    u_h = jax.random.uniform(k_h, (cd_k + 1, B_p, n_hid_p), jnp.float32)
    u_v = jax.random.uniform(k_v, (cd_k, B_p, n_vis), jnp.float32)

    grid = (B_p // tb,)
    kernel = functools.partial(rbm_cdk_kernel, cd_k=cd_k)

    n_mm = 2 * cd_k + 1
    cost = pl.CostEstimate(
        flops=2 * B_p * n_vis * n_hid_p * n_mm,
        transcendentals=B_p * ((cd_k + 1) * n_hid_p + cd_k * n_vis),
        bytes_accessed=4 * (2 * B_p * n_vis + n_hid_p * n_vis
                            + u_h.size + u_v.size + n_hid_p + n_vis),
    )

    v_ = pl.pallas_call(
        kernel,
        out_shape=jax.ShapeDtypeStruct((B_p, n_vis), jnp.float32),
        grid=grid,
        in_specs=[
            pl.BlockSpec((tb, n_vis), lambda i: (i, 0)),                 # v (batch-tiled)
            pl.BlockSpec((n_hid_p, n_vis), lambda i: (0, 0)),            # W (replicated)
            pl.BlockSpec((1, n_hid_p), lambda i: (0, 0)),                # h_bias
            pl.BlockSpec((1, n_vis), lambda i: (0, 0)),                  # v_bias
            pl.BlockSpec((cd_k + 1, tb, n_hid_p), lambda i: (0, i, 0)),  # hidden uniforms
            pl.BlockSpec((cd_k, tb, n_vis), lambda i: (0, i, 0)),        # visible uniforms
        ],
        out_specs=pl.BlockSpec((tb, n_vis), lambda i: (i, 0)),
        compiler_params=pltpu.CompilerParams(
            dimension_semantics=("parallel",)),
        cost_estimate=cost,
    )(v_p, W_p, hb_p, vb_p, u_h, u_v)

    return v, v_[:B]


def init_dbm_params(key, n_visible, n_hidden):
    """Parameter init matching RBM.__init__ (uniform weights, zero biases)."""
    params = []
    in_size = n_visible
    for nh in n_hidden:
        key, sub = jax.random.split(key)
        bound = 1.0 / (in_size + nh)
        W = jax.random.uniform(sub, (nh, in_size), jnp.float32,
                               minval=-bound, maxval=bound)
        params.append({"W": W,
                       "v_bias": jnp.zeros((in_size,), jnp.float32),
                       "h_bias": jnp.zeros((nh,), jnp.float32)})
        in_size = nh
    return params
    # TODO(synk): the non-greedy (mean-field / PCD) branch of DBM.forward is not
    # exercised by the default arguments and is not implemented here.


if __name__ == "__main__":
    # Shapes consistent with DBM defaults: n_visible=256, n_hidden=[100, 64];
    # greedy forward with ith_layer=0 only touches the first RBM layer.
    B = 16
    n_visible = 256
    n_hidden = [100, 64]
    CD_K = 10

    key = jax.random.PRNGKey(0)
    key, k_params, k_v, k_samp = jax.random.split(key, 4)

    rbm_params = init_dbm_params(k_params, n_visible, n_hidden)
    W0 = rbm_params[0]["W"]            # (100, 256)
    v_bias0 = rbm_params[0]["v_bias"]  # (256,)
    h_bias0 = rbm_params[0]["h_bias"]  # (100,)

    # binary visible input (like binarized MNIST pixels)
    v_input = jax.random.bernoulli(k_v, 0.5, (B, n_visible)).astype(jnp.float32)

    v_out, v_reconstructed = dbm_forward_greedy(v_input, W0, h_bias0, v_bias0,
                                                k_samp, cd_k=CD_K)
    jax.block_until_ready(v_reconstructed)

    assert v_out.shape == (B, n_visible)
    assert v_reconstructed.shape == (B, n_visible)
    # samples must be binary
    assert bool(jnp.all((v_reconstructed == 0.0) | (v_reconstructed == 1.0)))

    print("KERNEL_OK")
</pallas_src>

<mosaic_0001>
module attributes {stable_mosaic.version = 11 : i64} {
  func.func @rbm_cdk_kernel(%arg0: i32, %arg1: memref<16x256xf32, #tpu.memory_space<vmem>>, %arg2: memref<128x256xf32, #tpu.memory_space<vmem>>, %arg3: memref<1x128xf32, #tpu.memory_space<vmem>>, %arg4: memref<1x256xf32, #tpu.memory_space<vmem>>, %arg5: memref<11x16x128xf32, #tpu.memory_space<vmem>>, %arg6: memref<10x16x256xf32, #tpu.memory_space<vmem>>, %arg7: memref<16x256xf32, #tpu.memory_space<vmem>>) attributes {dimension_semantics = [#tpu.dimension_semantics<parallel>], iteration_bounds = array<i64: 1>, scalar_prefetch = 0 : i64, scratch_operands = 0 : i64, tpu.core_type = #tpu.core_type<tc>, window_params = [{transform_indices = @transform_0, window_bounds = array<i64: 16, 256>}, {pipeline_mode = #tpu.pipeline_mode<synchronous>, transform_indices = @transform_1, window_bounds = array<i64: 128, 256>}, {pipeline_mode = #tpu.pipeline_mode<synchronous>, transform_indices = @transform_2, window_bounds = array<i64: 1, 128>}, {pipeline_mode = #tpu.pipeline_mode<synchronous>, transform_indices = @transform_3, window_bounds = array<i64: 1, 256>}, {transform_indices = @transform_4, window_bounds = array<i64: 11, 16, 128>}, {transform_indices = @transform_5, window_bounds = array<i64: 10, 16, 256>}, {transform_indices = @transform_6, window_bounds = array<i64: 16, 256>}]} {
    %c0 = arith.constant 0 : index
    %c0_0 = arith.constant 0 : index
    %0 = vector.load %arg1[%c0, %c0_0] : memref<16x256xf32, #tpu.memory_space<vmem>>, vector<16x256xf32>
    %c0_1 = arith.constant 0 : index
    %c0_2 = arith.constant 0 : index
    %1 = vector.load %arg2[%c0_1, %c0_2] : memref<128x256xf32, #tpu.memory_space<vmem>>, vector<128x256xf32>
    %2 = arith.truncf %1 : vector<128x256xf32> to vector<128x256xbf16>
    %c0_3 = arith.constant 0 : index
    %c0_4 = arith.constant 0 : index
    %3 = vector.load %arg3[%c0_3, %c0_4] : memref<1x128xf32, #tpu.memory_space<vmem>>, vector<1x128xf32>
    %c0_5 = arith.constant 0 : index
    %c0_6 = arith.constant 0 : index
    %4 = vector.load %arg4[%c0_5, %c0_6] : memref<1x256xf32, #tpu.memory_space<vmem>>, vector<1x256xf32>
    %c0_7 = arith.constant 0 : index
    %c0_8 = arith.constant 0 : index
    %c0_9 = arith.constant 0 : index
    %5 = vector.load %arg5[%c0_7, %c0_8, %c0_9] : memref<11x16x128xf32, #tpu.memory_space<vmem>>, vector<1x16x128xf32>
    %6 = vector.shape_cast %5 : vector<1x16x128xf32> to vector<16x128xf32>
    %cst = arith.constant dense<0.000000e+00> : vector<16x128xf32>
    %7 = tpu.matmul %0, %1, %cst {dimension_numbers = #tpu.dot_dimension_numbers<[1], [1], [0], [0], [0, 0, 1, 0], [], []>} : vector<16x256xf32>, vector<128x256xf32>, vector<16x128xf32> -> vector<16x128xf32>
    %8 = vector.broadcast %3 : vector<1x128xf32> to vector<16x128xf32>
    %9 = arith.addf %7, %8 : vector<16x128xf32>
    %10 = arith.negf %9 : vector<16x128xf32>
    %11 = math.exp %10 : vector<16x128xf32>
    %cst_10 = arith.constant 1.000000e+00 : f32
    %12 = vector.broadcast %cst_10 : f32 to vector<16x128xf32>
    %13 = arith.addf %12, %11 : vector<16x128xf32>
    %14 = arith.divf %12, %13 : vector<16x128xf32>
    %15 = arith.cmpf olt, %6, %14 : vector<16x128xf32>
    %16 = arith.extui %15 : vector<16x128xi1> to vector<16x128xi32>
    %17 = arith.sitofp %16 : vector<16x128xi32> to vector<16x128xf32>
    %c0_11 = arith.constant 0 : index
    %c0_12 = arith.constant 0 : index
    %c0_13 = arith.constant 0 : index
    %18 = vector.load %arg6[%c0_11, %c0_12, %c0_13] : memref<10x16x256xf32, #tpu.memory_space<vmem>>, vector<1x16x256xf32>
    %19 = vector.shape_cast %18 : vector<1x16x256xf32> to vector<16x256xf32>
    %20 = arith.truncf %17 : vector<16x128xf32> to vector<16x128xbf16>
    %cst_14 = arith.constant dense<0.000000e+00> : vector<16x256xf32>
    %21 = tpu.matmul %20, %2, %cst_14 {dimension_numbers = #tpu.dot_dimension_numbers<[1], [0], [0], [1], [0, 0, 1, 1], [], []>} : vector<16x128xbf16>, vector<128x256xbf16>, vector<16x256xf32> -> vector<16x256xf32>
    %22 = vector.broadcast %4 : vector<1x256xf32> to vector<16x256xf32>
    %23 = arith.addf %21, %22 : vector<16x256xf32>
    %24 = arith.negf %23 : vector<16x256xf32>
    %25 = math.exp %24 : vector<16x256xf32>
    %cst_15 = arith.constant 1.000000e+00 : f32
    %26 = vector.broadcast %cst_15 : f32 to vector<16x256xf32>
    %27 = arith.addf %26, %25 : vector<16x256xf32>
    %28 = arith.divf %26, %27 : vector<16x256xf32>
    %29 = arith.cmpf olt, %19, %28 : vector<16x256xf32>
    %30 = arith.extui %29 : vector<16x256xi1> to vector<16x256xi32>
    %31 = arith.sitofp %30 : vector<16x256xi32> to vector<16x256xf32>
    %32 = arith.truncf %31 : vector<16x256xf32> to vector<16x256xbf16>
    %c1 = arith.constant 1 : index
    %c0_16 = arith.constant 0 : index
    %c0_17 = arith.constant 0 : index
    %33 = vector.load %arg5[%c1, %c0_16, %c0_17] : memref<11x16x128xf32, #tpu.memory_space<vmem>>, vector<1x16x128xf32>
    %34 = vector.shape_cast %33 : vector<1x16x128xf32> to vector<16x128xf32>
    %cst_18 = arith.constant dense<0.000000e+00> : vector<16x128xf32>
    %35 = tpu.matmul %32, %2, %cst_18 {dimension_numbers = #tpu.dot_dimension_numbers<[1], [1], [0], [0], [0, 0, 1, 0], [], []>} : vector<16x256xbf16>, vector<128x256xbf16>, vector<16x128xf32> -> vector<16x128xf32>
    %36 = vector.broadcast %3 : vector<1x128xf32> to vector<16x128xf32>
    %37 = arith.addf %35, %36 : vector<16x128xf32>
    %38 = arith.negf %37 : vector<16x128xf32>
    %39 = math.exp %38 : vector<16x128xf32>
    %cst_19 = arith.constant 1.000000e+00 : f32
    %40 = vector.broadcast %cst_19 : f32 to vector<16x128xf32>
    %41 = arith.addf %40, %39 : vector<16x128xf32>
    %42 = arith.divf %40, %41 : vector<16x128xf32>
    %43 = arith.cmpf olt, %34, %42 : vector<16x128xf32>
    %44 = arith.extui %43 : vector<16x128xi1> to vector<16x128xi32>
    %45 = arith.sitofp %44 : vector<16x128xi32> to vector<16x128xf32>
    %c1_20 = arith.constant 1 : index
    %c0_21 = arith.constant 0 : index
    %c0_22 = arith.constant 0 : index
    %46 = vector.load %arg6[%c1_20, %c0_21, %c0_22] : memref<10x16x256xf32, #tpu.memory_space<vmem>>, vector<1x16x256xf32>
    %47 = vector.shape_cast %46 : vector<1x16x256xf32> to vector<16x256xf32>
    %48 = arith.truncf %45 : vector<16x128xf32> to vector<16x128xbf16>
    %cst_23 = arith.constant dense<0.000000e+00> : vector<16x256xf32>
    %49 = tpu.matmul %48, %2, %cst_23 {dimension_numbers = #tpu.dot_dimension_numbers<[1], [0], [0], [1], [0, 0, 1, 1], [], []>} : vector<16x128xbf16>, vector<128x256xbf16>, vector<16x256xf32> -> vector<16x256xf32>
    %50 = vector.broadcast %4 : vector<1x256xf32> to vector<16x256xf32>
    %51 = arith.addf %49, %50 : vector<16x256xf32>
    %52 = arith.negf %51 : vector<16x256xf32>
    %53 = math.exp %52 : vector<16x256xf32>
    %cst_24 = arith.constant 1.000000e+00 : f32
    %54 = vector.broadcast %cst_24 : f32 to vector<16x256xf32>
    %55 = arith.addf %54, %53 : vector<16x256xf32>
    %56 = arith.divf %54, %55 : vector<16x256xf32>
    %57 = arith.cmpf olt, %47, %56 : vector<16x256xf32>
    %58 = arith.extui %57 : vector<16x256xi1> to vector<16x256xi32>
    %59 = arith.sitofp %58 : vector<16x256xi32> to vector<16x256xf32>
    %60 = arith.truncf %59 : vector<16x256xf32> to vector<16x256xbf16>
    %c2 = arith.constant 2 : index
    %c0_25 = arith.constant 0 : index
    %c0_26 = arith.constant 0 : index
    %61 = vector.load %arg5[%c2, %c0_25, %c0_26] : memref<11x16x128xf32, #tpu.memory_space<vmem>>, vector<1x16x128xf32>
    %62 = vector.shape_cast %61 : vector<1x16x128xf32> to vector<16x128xf32>
    %cst_27 = arith.constant dense<0.000000e+00> : vector<16x128xf32>
    %63 = tpu.matmul %60, %2, %cst_27 {dimension_numbers = #tpu.dot_dimension_numbers<[1], [1], [0], [0], [0, 0, 1, 0], [], []>} : vector<16x256xbf16>, vector<128x256xbf16>, vector<16x128xf32> -> vector<16x128xf32>
    %64 = vector.broadcast %3 : vector<1x128xf32> to vector<16x128xf32>
    %65 = arith.addf %63, %64 : vector<16x128xf32>
    %66 = arith.negf %65 : vector<16x128xf32>
    %67 = math.exp %66 : vector<16x128xf32>
    %cst_28 = arith.constant 1.000000e+00 : f32
    %68 = vector.broadcast %cst_28 : f32 to vector<16x128xf32>
    %69 = arith.addf %68, %67 : vector<16x128xf32>
    %70 = arith.divf %68, %69 : vector<16x128xf32>
    %71 = arith.cmpf olt, %62, %70 : vector<16x128xf32>
    %72 = arith.extui %71 : vector<16x128xi1> to vector<16x128xi32>
    %73 = arith.sitofp %72 : vector<16x128xi32> to vector<16x128xf32>
    %c2_29 = arith.constant 2 : index
    %c0_30 = arith.constant 0 : index
    %c0_31 = arith.constant 0 : index
    %74 = vector.load %arg6[%c2_29, %c0_30, %c0_31] : memref<10x16x256xf32, #tpu.memory_space<vmem>>, vector<1x16x256xf32>
    %75 = vector.shape_cast %74 : vector<1x16x256xf32> to vector<16x256xf32>
    %76 = arith.truncf %73 : vector<16x128xf32> to vector<16x128xbf16>
    %cst_32 = arith.constant dense<0.000000e+00> : vector<16x256xf32>
    %77 = tpu.matmul %76, %2, %cst_32 {dimension_numbers = #tpu.dot_dimension_numbers<[1], [0], [0], [1], [0, 0, 1, 1], [], []>} : vector<16x128xbf16>, vector<128x256xbf16>, vector<16x256xf32> -> vector<16x256xf32>
    %78 = vector.broadcast %4 : vector<1x256xf32> to vector<16x256xf32>
    %79 = arith.addf %77, %78 : vector<16x256xf32>
    %80 = arith.negf %79 : vector<16x256xf32>
    %81 = math.exp %80 : vector<16x256xf32>
    %cst_33 = arith.constant 1.000000e+00 : f32
    %82 = vector.broadcast %cst_33 : f32 to vector<16x256xf32>
    %83 = arith.addf %82, %81 : vector<16x256xf32>
    %84 = arith.divf %82, %83 : vector<16x256xf32>
    %85 = arith.cmpf olt, %75, %84 : vector<16x256xf32>
    %86 = arith.extui %85 : vector<16x256xi1> to vector<16x256xi32>
    %87 = arith.sitofp %86 : vector<16x256xi32> to vector<16x256xf32>
    %88 = arith.truncf %87 : vector<16x256xf32> to vector<16x256xbf16>
    %c3 = arith.constant 3 : index
    %c0_34 = arith.constant 0 : index
    %c0_35 = arith.constant 0 : index
    %89 = vector.load %arg5[%c3, %c0_34, %c0_35] : memref<11x16x128xf32, #tpu.memory_space<vmem>>, vector<1x16x128xf32>
    %90 = vector.shape_cast %89 : vector<1x16x128xf32> to vector<16x128xf32>
    %cst_36 = arith.constant dense<0.000000e+00> : vector<16x128xf32>
    %91 = tpu.matmul %88, %2, %cst_36 {dimension_numbers = #tpu.dot_dimension_numbers<[1], [1], [0], [0], [0, 0, 1, 0], [], []>} : vector<16x256xbf16>, vector<128x256xbf16>, vector<16x128xf32> -> vector<16x128xf32>
    %92 = vector.broadcast %3 : vector<1x128xf32> to vector<16x128xf32>
    %93 = arith.addf %91, %92 : vector<16x128xf32>
    %94 = arith.negf %93 : vector<16x128xf32>
    %95 = math.exp %94 : vector<16x128xf32>
    %cst_37 = arith.constant 1.000000e+00 : f32
    %96 = vector.broadcast %cst_37 : f32 to vector<16x128xf32>
    %97 = arith.addf %96, %95 : vector<16x128xf32>
    %98 = arith.divf %96, %97 : vector<16x128xf32>
    %99 = arith.cmpf olt, %90, %98 : vector<16x128xf32>
    %100 = arith.extui %99 : vector<16x128xi1> to vector<16x128xi32>
    %101 = arith.sitofp %100 : vector<16x128xi32> to vector<16x128xf32>
    %c3_38 = arith.constant 3 : index
    %c0_39 = arith.constant 0 : index
    %c0_40 = arith.constant 0 : index
    %102 = vector.load %arg6[%c3_38, %c0_39, %c0_40] : memref<10x16x256xf32, #tpu.memory_space<vmem>>, vector<1x16x256xf32>
    %103 = vector.shape_cast %102 : vector<1x16x256xf32> to vector<16x256xf32>
    %104 = arith.truncf %101 : vector<16x128xf32> to vector<16x128xbf16>
    %cst_41 = arith.constant dense<0.000000e+00> : vector<16x256xf32>
    %105 = tpu.matmul %104, %2, %cst_41 {dimension_numbers = #tpu.dot_dimension_numbers<[1], [0], [0], [1], [0, 0, 1, 1], [], []>} : vector<16x128xbf16>, vector<128x256xbf16>, vector<16x256xf32> -> vector<16x256xf32>
    %106 = vector.broadcast %4 : vector<1x256xf32> to vector<16x256xf32>
    %107 = arith.addf %105, %106 : vector<16x256xf32>
    %108 = arith.negf %107 : vector<16x256xf32>
    %109 = math.exp %108 : vector<16x256xf32>
    %cst_42 = arith.constant 1.000000e+00 : f32
    %110 = vector.broadcast %cst_42 : f32 to vector<16x256xf32>
    %111 = arith.addf %110, %109 : vector<16x256xf32>
    %112 = arith.divf %110, %111 : vector<16x256xf32>
    %113 = arith.cmpf olt, %103, %112 : vector<16x256xf32>
    %114 = arith.extui %113 : vector<16x256xi1> to vector<16x256xi32>
    %115 = arith.sitofp %114 : vector<16x256xi32> to vector<16x256xf32>
    %116 = arith.truncf %115 : vector<16x256xf32> to vector<16x256xbf16>
    %c4 = arith.constant 4 : index
    %c0_43 = arith.constant 0 : index
    %c0_44 = arith.constant 0 : index
    %117 = vector.load %arg5[%c4, %c0_43, %c0_44] : memref<11x16x128xf32, #tpu.memory_space<vmem>>, vector<1x16x128xf32>
    %118 = vector.shape_cast %117 : vector<1x16x128xf32> to vector<16x128xf32>
    %cst_45 = arith.constant dense<0.000000e+00> : vector<16x128xf32>
    %119 = tpu.matmul %116, %2, %cst_45 {dimension_numbers = #tpu.dot_dimension_numbers<[1], [1], [0], [0], [0, 0, 1, 0], [], []>} : vector<16x256xbf16>, vector<128x256xbf16>, vector<16x128xf32> -> vector<16x128xf32>
    %120 = vector.broadcast %3 : vector<1x128xf32> to vector<16x128xf32>
    %121 = arith.addf %119, %120 : vector<16x128xf32>
    %122 = arith.negf %121 : vector<16x128xf32>
    %123 = math.exp %122 : vector<16x128xf32>
    %cst_46 = arith.constant 1.000000e+00 : f32
    %124 = vector.broadcast %cst_46 : f32 to vector<16x128xf32>
    %125 = arith.addf %124, %123 : vector<16x128xf32>
    %126 = arith.divf %124, %125 : vector<16x128xf32>
    %127 = arith.cmpf olt, %118, %126 : vector<16x128xf32>
    %128 = arith.extui %127 : vector<16x128xi1> to vector<16x128xi32>
    %129 = arith.sitofp %128 : vector<16x128xi32> to vector<16x128xf32>
    %c4_47 = arith.constant 4 : index
    %c0_48 = arith.constant 0 : index
    %c0_49 = arith.constant 0 : index
    %130 = vector.load %arg6[%c4_47, %c0_48, %c0_49] : memref<10x16x256xf32, #tpu.memory_space<vmem>>, vector<1x16x256xf32>
    %131 = vector.shape_cast %130 : vector<1x16x256xf32> to vector<16x256xf32>
    %132 = arith.truncf %129 : vector<16x128xf32> to vector<16x128xbf16>
    %cst_50 = arith.constant dense<0.000000e+00> : vector<16x256xf32>
    %133 = tpu.matmul %132, %2, %cst_50 {dimension_numbers = #tpu.dot_dimension_numbers<[1], [0], [0], [1], [0, 0, 1, 1], [], []>} : vector<16x128xbf16>, vector<128x256xbf16>, vector<16x256xf32> -> vector<16x256xf32>
    %134 = vector.broadcast %4 : vector<1x256xf32> to vector<16x256xf32>
    %135 = arith.addf %133, %134 : vector<16x256xf32>
    %136 = arith.negf %135 : vector<16x256xf32>
    %137 = math.exp %136 : vector<16x256xf32>
    %cst_51 = arith.constant 1.000000e+00 : f32
    %138 = vector.broadcast %cst_51 : f32 to vector<16x256xf32>
    %139 = arith.addf %138, %137 : vector<16x256xf32>
    %140 = arith.divf %138, %139 : vector<16x256xf32>
    %141 = arith.cmpf olt, %131, %140 : vector<16x256xf32>
    %142 = arith.extui %141 : vector<16x256xi1> to vector<16x256xi32>
    %143 = arith.sitofp %142 : vector<16x256xi32> to vector<16x256xf32>
    %144 = arith.truncf %143 : vector<16x256xf32> to vector<16x256xbf16>
    %c5 = arith.constant 5 : index
    %c0_52 = arith.constant 0 : index
    %c0_53 = arith.constant 0 : index
    %145 = vector.load %arg5[%c5, %c0_52, %c0_53] : memref<11x16x128xf32, #tpu.memory_space<vmem>>, vector<1x16x128xf32>
    %146 = vector.shape_cast %145 : vector<1x16x128xf32> to vector<16x128xf32>
    %cst_54 = arith.constant dense<0.000000e+00> : vector<16x128xf32>
    %147 = tpu.matmul %144, %2, %cst_54 {dimension_numbers = #tpu.dot_dimension_numbers<[1], [1], [0], [0], [0, 0, 1, 0], [], []>} : vector<16x256xbf16>, vector<128x256xbf16>, vector<16x128xf32> -> vector<16x128xf32>
    %148 = vector.broadcast %3 : vector<1x128xf32> to vector<16x128xf32>
    %149 = arith.addf %147, %148 : vector<16x128xf32>
    %150 = arith.negf %149 : vector<16x128xf32>
    %151 = math.exp %150 : vector<16x128xf32>
    %cst_55 = arith.constant 1.000000e+00 : f32
    %152 = vector.broadcast %cst_55 : f32 to vector<16x128xf32>
    %153 = arith.addf %152, %151 : vector<16x128xf32>
    %154 = arith.divf %152, %153 : vector<16x128xf32>
    %155 = arith.cmpf olt, %146, %154 : vector<16x128xf32>
    %156 = arith.extui %155 : vector<16x128xi1> to vector<16x128xi32>
    %157 = arith.sitofp %156 : vector<16x128xi32> to vector<16x128xf32>
    %c5_56 = arith.constant 5 : index
    %c0_57 = arith.constant 0 : index
    %c0_58 = arith.constant 0 : index
    %158 = vector.load %arg6[%c5_56, %c0_57, %c0_58] : memref<10x16x256xf32, #tpu.memory_space<vmem>>, vector<1x16x256xf32>
    %159 = vector.shape_cast %158 : vector<1x16x256xf32> to vector<16x256xf32>
    %160 = arith.truncf %157 : vector<16x128xf32> to vector<16x128xbf16>
    %cst_59 = arith.constant dense<0.000000e+00> : vector<16x256xf32>
    %161 = tpu.matmul %160, %2, %cst_59 {dimension_numbers = #tpu.dot_dimension_numbers<[1], [0], [0], [1], [0, 0, 1, 1], [], []>} : vector<16x128xbf16>, vector<128x256xbf16>, vector<16x256xf32> -> vector<16x256xf32>
    %162 = vector.broadcast %4 : vector<1x256xf32> to vector<16x256xf32>
    %163 = arith.addf %161, %162 : vector<16x256xf32>
    %164 = arith.negf %163 : vector<16x256xf32>
    %165 = math.exp %164 : vector<16x256xf32>
    %cst_60 = arith.constant 1.000000e+00 : f32
    %166 = vector.broadcast %cst_60 : f32 to vector<16x256xf32>
    %167 = arith.addf %166, %165 : vector<16x256xf32>
    %168 = arith.divf %166, %167 : vector<16x256xf32>
    %169 = arith.cmpf olt, %159, %168 : vector<16x256xf32>
    %170 = arith.extui %169 : vector<16x256xi1> to vector<16x256xi32>
    %171 = arith.sitofp %170 : vector<16x256xi32> to vector<16x256xf32>
    %172 = arith.truncf %171 : vector<16x256xf32> to vector<16x256xbf16>
    %c6 = arith.constant 6 : index
    %c0_61 = arith.constant 0 : index
    %c0_62 = arith.constant 0 : index
    %173 = vector.load %arg5[%c6, %c0_61, %c0_62] : memref<11x16x128xf32, #tpu.memory_space<vmem>>, vector<1x16x128xf32>
    %174 = vector.shape_cast %173 : vector<1x16x128xf32> to vector<16x128xf32>
    %cst_63 = arith.constant dense<0.000000e+00> : vector<16x128xf32>
    %175 = tpu.matmul %172, %2, %cst_63 {dimension_numbers = #tpu.dot_dimension_numbers<[1], [1], [0], [0], [0, 0, 1, 0], [], []>} : vector<16x256xbf16>, vector<128x256xbf16>, vector<16x128xf32> -> vector<16x128xf32>
    %176 = vector.broadcast %3 : vector<1x128xf32> to vector<16x128xf32>
    %177 = arith.addf %175, %176 : vector<16x128xf32>
    %178 = arith.negf %177 : vector<16x128xf32>
    %179 = math.exp %178 : vector<16x128xf32>
    %cst_64 = arith.constant 1.000000e+00 : f32
    %180 = vector.broadcast %cst_64 : f32 to vector<16x128xf32>
    %181 = arith.addf %180, %179 : vector<16x128xf32>
    %182 = arith.divf %180, %181 : vector<16x128xf32>
    %183 = arith.cmpf olt, %174, %182 : vector<16x128xf32>
    %184 = arith.extui %183 : vector<16x128xi1> to vector<16x128xi32>
    %185 = arith.sitofp %184 : vector<16x128xi32> to vector<16x128xf32>
    %c6_65 = arith.constant 6 : index
    %c0_66 = arith.constant 0 : index
    %c0_67 = arith.constant 0 : index
    %186 = vector.load %arg6[%c6_65, %c0_66, %c0_67] : memref<10x16x256xf32, #tpu.memory_space<vmem>>, vector<1x16x256xf32>
    %187 = vector.shape_cast %186 : vector<1x16x256xf32> to vector<16x256xf32>
    %188 = arith.truncf %185 : vector<16x128xf32> to vector<16x128xbf16>
    %cst_68 = arith.constant dense<0.000000e+00> : vector<16x256xf32>
    %189 = tpu.matmul %188, %2, %cst_68 {dimension_numbers = #tpu.dot_dimension_numbers<[1], [0], [0], [1], [0, 0, 1, 1], [], []>} : vector<16x128xbf16>, vector<128x256xbf16>, vector<16x256xf32> -> vector<16x256xf32>
    %190 = vector.broadcast %4 : vector<1x256xf32> to vector<16x256xf32>
    %191 = arith.addf %189, %190 : vector<16x256xf32>
    %192 = arith.negf %191 : vector<16x256xf32>
    %193 = math.exp %192 : vector<16x256xf32>
    %cst_69 = arith.constant 1.000000e+00 : f32
    %194 = vector.broadcast %cst_69 : f32 to vector<16x256xf32>
    %195 = arith.addf %194, %193 : vector<16x256xf32>
    %196 = arith.divf %194, %195 : vector<16x256xf32>
    %197 = arith.cmpf olt, %187, %196 : vector<16x256xf32>
    %198 = arith.extui %197 : vector<16x256xi1> to vector<16x256xi32>
    %199 = arith.sitofp %198 : vector<16x256xi32> to vector<16x256xf32>
    %200 = arith.truncf %199 : vector<16x256xf32> to vector<16x256xbf16>
    %c7 = arith.constant 7 : index
    %c0_70 = arith.constant 0 : index
    %c0_71 = arith.constant 0 : index
    %201 = vector.load %arg5[%c7, %c0_70, %c0_71] : memref<11x16x128xf32, #tpu.memory_space<vmem>>, vector<1x16x128xf32>
    %202 = vector.shape_cast %201 : vector<1x16x128xf32> to vector<16x128xf32>
    %cst_72 = arith.constant dense<0.000000e+00> : vector<16x128xf32>
    %203 = tpu.matmul %200, %2, %cst_72 {dimension_numbers = #tpu.dot_dimension_numbers<[1], [1], [0], [0], [0, 0, 1, 0], [], []>} : vector<16x256xbf16>, vector<128x256xbf16>, vector<16x128xf32> -> vector<16x128xf32>
    %204 = vector.broadcast %3 : vector<1x128xf32> to vector<16x128xf32>
    %205 = arith.addf %203, %204 : vector<16x128xf32>
    %206 = arith.negf %205 : vector<16x128xf32>
    %207 = math.exp %206 : vector<16x128xf32>
    %cst_73 = arith.constant 1.000000e+00 : f32
    %208 = vector.broadcast %cst_73 : f32 to vector<16x128xf32>
    %209 = arith.addf %208, %207 : vector<16x128xf32>
    %210 = arith.divf %208, %209 : vector<16x128xf32>
    %211 = arith.cmpf olt, %202, %210 : vector<16x128xf32>
    %212 = arith.extui %211 : vector<16x128xi1> to vector<16x128xi32>
    %213 = arith.sitofp %212 : vector<16x128xi32> to vector<16x128xf32>
    %c7_74 = arith.constant 7 : index
    %c0_75 = arith.constant 0 : index
    %c0_76 = arith.constant 0 : index
    %214 = vector.load %arg6[%c7_74, %c0_75, %c0_76] : memref<10x16x256xf32, #tpu.memory_space<vmem>>, vector<1x16x256xf32>
    %215 = vector.shape_cast %214 : vector<1x16x256xf32> to vector<16x256xf32>
    %216 = arith.truncf %213 : vector<16x128xf32> to vector<16x128xbf16>
    %cst_77 = arith.constant dense<0.000000e+00> : vector<16x256xf32>
    %217 = tpu.matmul %216, %2, %cst_77 {dimension_numbers = #tpu.dot_dimension_numbers<[1], [0], [0], [1], [0, 0, 1, 1], [], []>} : vector<16x128xbf16>, vector<128x256xbf16>, vector<16x256xf32> -> vector<16x256xf32>
    %218 = vector.broadcast %4 : vector<1x256xf32> to vector<16x256xf32>
    %219 = arith.addf %217, %218 : vector<16x256xf32>
    %220 = arith.negf %219 : vector<16x256xf32>
    %221 = math.exp %220 : vector<16x256xf32>
    %cst_78 = arith.constant 1.000000e+00 : f32
    %222 = vector.broadcast %cst_78 : f32 to vector<16x256xf32>
    %223 = arith.addf %222, %221 : vector<16x256xf32>
    %224 = arith.divf %222, %223 : vector<16x256xf32>
    %225 = arith.cmpf olt, %215, %224 : vector<16x256xf32>
    %226 = arith.extui %225 : vector<16x256xi1> to vector<16x256xi32>
    %227 = arith.sitofp %226 : vector<16x256xi32> to vector<16x256xf32>
    %228 = arith.truncf %227 : vector<16x256xf32> to vector<16x256xbf16>
    %c8 = arith.constant 8 : index
    %c0_79 = arith.constant 0 : index
    %c0_80 = arith.constant 0 : index
    %229 = vector.load %arg5[%c8, %c0_79, %c0_80] : memref<11x16x128xf32, #tpu.memory_space<vmem>>, vector<1x16x128xf32>
    %230 = vector.shape_cast %229 : vector<1x16x128xf32> to vector<16x128xf32>
    %cst_81 = arith.constant dense<0.000000e+00> : vector<16x128xf32>
    %231 = tpu.matmul %228, %2, %cst_81 {dimension_numbers = #tpu.dot_dimension_numbers<[1], [1], [0], [0], [0, 0, 1, 0], [], []>} : vector<16x256xbf16>, vector<128x256xbf16>, vector<16x128xf32> -> vector<16x128xf32>
    %232 = vector.broadcast %3 : vector<1x128xf32> to vector<16x128xf32>
    %233 = arith.addf %231, %232 : vector<16x128xf32>
    %234 = arith.negf %233 : vector<16x128xf32>
    %235 = math.exp %234 : vector<16x128xf32>
    %cst_82 = arith.constant 1.000000e+00 : f32
    %236 = vector.broadcast %cst_82 : f32 to vector<16x128xf32>
    %237 = arith.addf %236, %235 : vector<16x128xf32>
    %238 = arith.divf %236, %237 : vector<16x128xf32>
    %239 = arith.cmpf olt, %230, %238 : vector<16x128xf32>
    %240 = arith.extui %239 : vector<16x128xi1> to vector<16x128xi32>
    %241 = arith.sitofp %240 : vector<16x128xi32> to vector<16x128xf32>
    %c8_83 = arith.constant 8 : index
    %c0_84 = arith.constant 0 : index
    %c0_85 = arith.constant 0 : index
    %242 = vector.load %arg6[%c8_83, %c0_84, %c0_85] : memref<10x16x256xf32, #tpu.memory_space<vmem>>, vector<1x16x256xf32>
    %243 = vector.shape_cast %242 : vector<1x16x256xf32> to vector<16x256xf32>
    %244 = arith.truncf %241 : vector<16x128xf32> to vector<16x128xbf16>
    %cst_86 = arith.constant dense<0.000000e+00> : vector<16x256xf32>
    %245 = tpu.matmul %244, %2, %cst_86 {dimension_numbers = #tpu.dot_dimension_numbers<[1], [0], [0], [1], [0, 0, 1, 1], [], []>} : vector<16x128xbf16>, vector<128x256xbf16>, vector<16x256xf32> -> vector<16x256xf32>
    %246 = vector.broadcast %4 : vector<1x256xf32> to vector<16x256xf32>
    %247 = arith.addf %245, %246 : vector<16x256xf32>
    %248 = arith.negf %247 : vector<16x256xf32>
    %249 = math.exp %248 : vector<16x256xf32>
    %cst_87 = arith.constant 1.000000e+00 : f32
    %250 = vector.broadcast %cst_87 : f32 to vector<16x256xf32>
    %251 = arith.addf %250, %249 : vector<16x256xf32>
    %252 = arith.divf %250, %251 : vector<16x256xf32>
    %253 = arith.cmpf olt, %243, %252 : vector<16x256xf32>
    %254 = arith.extui %253 : vector<16x256xi1> to vector<16x256xi32>
    %255 = arith.sitofp %254 : vector<16x256xi32> to vector<16x256xf32>
    %256 = arith.truncf %255 : vector<16x256xf32> to vector<16x256xbf16>
    %c9 = arith.constant 9 : index
    %c0_88 = arith.constant 0 : index
    %c0_89 = arith.constant 0 : index
    %257 = vector.load %arg5[%c9, %c0_88, %c0_89] : memref<11x16x128xf32, #tpu.memory_space<vmem>>, vector<1x16x128xf32>
    %258 = vector.shape_cast %257 : vector<1x16x128xf32> to vector<16x128xf32>
    %cst_90 = arith.constant dense<0.000000e+00> : vector<16x128xf32>
    %259 = tpu.matmul %256, %2, %cst_90 {dimension_numbers = #tpu.dot_dimension_numbers<[1], [1], [0], [0], [0, 0, 1, 0], [], []>} : vector<16x256xbf16>, vector<128x256xbf16>, vector<16x128xf32> -> vector<16x128xf32>
    %260 = vector.broadcast %3 : vector<1x128xf32> to vector<16x128xf32>
    %261 = arith.addf %259, %260 : vector<16x128xf32>
    %262 = arith.negf %261 : vector<16x128xf32>
    %263 = math.exp %262 : vector<16x128xf32>
    %cst_91 = arith.constant 1.000000e+00 : f32
    %264 = vector.broadcast %cst_91 : f32 to vector<16x128xf32>
    %265 = arith.addf %264, %263 : vector<16x128xf32>
    %266 = arith.divf %264, %265 : vector<16x128xf32>
    %267 = arith.cmpf olt, %258, %266 : vector<16x128xf32>
    %268 = arith.extui %267 : vector<16x128xi1> to vector<16x128xi32>
    %269 = arith.sitofp %268 : vector<16x128xi32> to vector<16x128xf32>
    %c9_92 = arith.constant 9 : index
    %c0_93 = arith.constant 0 : index
    %c0_94 = arith.constant 0 : index
    %270 = vector.load %arg6[%c9_92, %c0_93, %c0_94] : memref<10x16x256xf32, #tpu.memory_space<vmem>>, vector<1x16x256xf32>
    %271 = vector.shape_cast %270 : vector<1x16x256xf32> to vector<16x256xf32>
    %272 = arith.truncf %269 : vector<16x128xf32> to vector<16x128xbf16>
    %cst_95 = arith.constant dense<0.000000e+00> : vector<16x256xf32>
    %273 = tpu.matmul %272, %2, %cst_95 {dimension_numbers = #tpu.dot_dimension_numbers<[1], [0], [0], [1], [0, 0, 1, 1], [], []>} : vector<16x128xbf16>, vector<128x256xbf16>, vector<16x256xf32> -> vector<16x256xf32>
    %274 = vector.broadcast %4 : vector<1x256xf32> to vector<16x256xf32>
    %275 = arith.addf %273, %274 : vector<16x256xf32>
    %276 = arith.negf %275 : vector<16x256xf32>
    %277 = math.exp %276 : vector<16x256xf32>
    %cst_96 = arith.constant 1.000000e+00 : f32
    %278 = vector.broadcast %cst_96 : f32 to vector<16x256xf32>
    %279 = arith.addf %278, %277 : vector<16x256xf32>
    %280 = arith.divf %278, %279 : vector<16x256xf32>
    %281 = arith.cmpf olt, %271, %280 : vector<16x256xf32>
    %282 = arith.extui %281 : vector<16x256xi1> to vector<16x256xi32>
    %283 = arith.sitofp %282 : vector<16x256xi32> to vector<16x256xf32>
    %c0_97 = arith.constant 0 : index
    %c0_98 = arith.constant 0 : index
    %284 = vector.load %arg7[%c0_97, %c0_98] : memref<16x256xf32, #tpu.memory_space<vmem>>, vector<16x256xf32>
    tpu.vector_store %arg7[%c0_97, %c0_98], %283 {strides = array<i32>} : memref<16x256xf32, #tpu.memory_space<vmem>>, vector<16x256xf32>,
    return
  }
  func.func @transform_0(%arg0: i32) -> (i32, i32) {
    %c0_i32 = arith.constant 0 : i32
    %c0_i32_0 = arith.constant 0 : i32
    return %arg0, %c0_i32 : i32, i32
  }
  func.func @transform_1(%arg0: i32) -> (i32, i32) {
    %c0_i32 = arith.constant 0 : i32
    %c0_i32_0 = arith.constant 0 : i32
    %c0_i32_1 = arith.constant 0 : i32
    return %c0_i32, %c0_i32_0 : i32, i32
  }
  func.func @transform_2(%arg0: i32) -> (i32, i32) {
    %c0_i32 = arith.constant 0 : i32
    %c0_i32_0 = arith.constant 0 : i32
    %c0_i32_1 = arith.constant 0 : i32
    return %c0_i32, %c0_i32_0 : i32, i32
  }
  func.func @transform_3(%arg0: i32) -> (i32, i32) {
    %c0_i32 = arith.constant 0 : i32
    %c0_i32_0 = arith.constant 0 : i32
    %c0_i32_1 = arith.constant 0 : i32
    return %c0_i32, %c0_i32_0 : i32, i32
  }
  func.func @transform_4(%arg0: i32) -> (i32, i32, i32) {
    %c0_i32 = arith.constant 0 : i32
    %c0_i32_0 = arith.constant 0 : i32
    %c0_i32_1 = arith.constant 0 : i32
    return %c0_i32, %arg0, %c0_i32_0 : i32, i32, i32
  }
  func.func @transform_5(%arg0: i32) -> (i32, i32, i32) {
    %c0_i32 = arith.constant 0 : i32
    %c0_i32_0 = arith.constant 0 : i32
    %c0_i32_1 = arith.constant 0 : i32
    return %c0_i32, %arg0, %c0_i32_0 : i32, i32, i32
  }
  func.func @transform_6(%arg0: i32) -> (i32, i32) {
    %c0_i32 = arith.constant 0 : i32
    %c0_i32_0 = arith.constant 0 : i32
    return %arg0, %c0_i32 : i32, i32
  }
}

</mosaic_0001>

<llo_original>
// kernel: tpu_custom_call.1
$region0: #{tpu_custom_call.1}
  #allocation0 [shape = 'u32[]', space=smem, size = 0x4, offset = 0x4, fixed_abs, tag = 'smem constant byte address 0x4 - core index']
  #allocation1 [shape = 'u32[144,128]{1,0:T(1,128)}', space=vmem, size = 0x12000, scoped, tag = 'internal scratch']
  %s0 = inlined_call_operand.hbm [shape: f32[16,256], index: 0, kind: input, shape index: {}]
  %s1 = inlined_call_operand.hbm [shape: f32[128,256], index: 1, kind: input, shape index: {}]
  %s2 = inlined_call_operand.vmem [shape: f32[1,128], index: 2, kind: input, shape index: {}]
  %s3 = inlined_call_operand.vmem [shape: f32[1,256], index: 3, kind: input, shape index: {}]
  %s4 = inlined_call_operand.hbm [shape: f32[11,16,128], index: 4, kind: input, shape index: {}]
  %s5 = inlined_call_operand.hbm [shape: f32[10,16,256], index: 5, kind: input, shape index: {}]
  %s6 = inlined_call_operand.hbm [shape: f32[16,256], index: 6, kind: output, shape index: {}]
  %s7 = sld [smem:[#allocation0]]
  $region50: #{tpu_custom_call.1} parent=0
    _
  %s9 = ssub.s32 1, %s7
  %s10 = scalar_select 0, %s9, %s7
  $region1: #{tpu_custom_call.1} parent=0
    #allocation2 [shape = 'u8[16384]{0}', space=vmem, size = 0x4000, scoped, tag = 'input window, operand 0, single buffered']
    #allocation3 [shape = 's32[1]{0}', space=sflag, size = 0x4, scoped, tag = 'scoped memory for tpu_custom_call.1']
    #allocation4 [shape = 's32[1]{0}', space=sflag, size = 0x4, scoped, tag = 'scoped memory for tpu_custom_call.1']
    #allocation5 [shape = 'u8[131072]{0}', space=vmem, size = 0x20000, scoped, tag = 'input window, operand 1, single buffered']
    #allocation6 [shape = 's32[1]{0}', space=sflag, size = 0x4, scoped, tag = 'scoped memory for tpu_custom_call.1']
    #allocation7 [shape = 'u8[90112]{0}', space=vmem, size = 0x16000, scoped, tag = 'input window, operand 4, single buffered']
    #allocation8 [shape = 'u8[163840]{0}', space=vmem, size = 0x28000, scoped, tag = 'input window, operand 5, single buffered']
    #allocation9 [shape = 's32[1]{0}', space=sflag, size = 0x4, scoped, tag = 'scoped memory for tpu_custom_call.1']
    #allocation10 [shape = 'u8[16384]{0}', space=vmem, size = 0x4000, scoped, tag = 'output window, operand 0, single buffered']
    %11 = vsyncpa [#allocation3], 0
    %12 = vsyncpa [#allocation6], 0
    %13 = vsyncpa [#allocation9], 0
    %14 = vsyncpa [#allocation4], 0
    // Predicated region
    $region2: #{tpu_custom_call.1} parent=1 // pred_check
      _
    $region3: #{tpu_custom_call.1} parent=1 // pred_check_branch
      %16 = sbr.rel (0) target = $region5
    $region4: #{tpu_custom_call.1} parent=1 // pred_region
      %s18 = ssub.s32 512, 512
      %19 = vsyncadd [#allocation3], %s18
      %s20 = sshll.u32 [#allocation2], 4
      %s21 = int_to_ptr.vmem [resolvable:$true] %s20
      %26 = dma.hbm_to_vmem [thread:$0]  %s0, 512, %s21, [#allocation3], 256, 256, 16
    $region5: #{tpu_custom_call.1} parent=1 // pred_fallthru
      _
    // Predicated region
    $region6: #{tpu_custom_call.1} parent=1 // pred_check
      _
    $region7: #{tpu_custom_call.1} parent=1 // pred_check_branch
      %28 = sbr.rel (0) target = $region9
    $region8: #{tpu_custom_call.1} parent=1 // pred_region
      %s30 = ssub.s32 4096, 4096
      %31 = vsyncadd [#allocation6], %s30
      %s32 = sshll.u32 [#allocation5], 4
      %s33 = int_to_ptr.vmem [resolvable:$true] %s32
      %38 = dma.hbm_to_vmem [thread:$0]  %s1, 4096, %s33, [#allocation6], 256, 256, 16
    $region9: #{tpu_custom_call.1} parent=1 // pred_fallthru
      _
    // Predicated region
    $region10: #{tpu_custom_call.1} parent=1 // pred_check
      _
    $region11: #{tpu_custom_call.1} parent=1 // pred_check_branch
      %40 = sbr.rel (0) target = $region13
    $region12: #{tpu_custom_call.1} parent=1 // pred_region
      _
    $region13: #{tpu_custom_call.1} parent=1 // pred_fallthru
      _
    // Predicated region
    $region14: #{tpu_custom_call.1} parent=1 // pred_check
      _
    $region15: #{tpu_custom_call.1} parent=1 // pred_check_branch
      %42 = sbr.rel (0) target = $region17
    $region16: #{tpu_custom_call.1} parent=1 // pred_region
      _
    $region17: #{tpu_custom_call.1} parent=1 // pred_fallthru
      _
    // Predicated region
    $region18: #{tpu_custom_call.1} parent=1 // pred_check
      _
    $region19: #{tpu_custom_call.1} parent=1 // pred_check_branch
      %44 = sbr.rel (0) target = $region21
    $region20: #{tpu_custom_call.1} parent=1 // pred_region
      %s46 = ssub.s32 2816, 2816
      %47 = vsyncadd [#allocation6], %s46
      %s48 = sshll.u32 [#allocation7], 4
      %s49 = int_to_ptr.vmem [resolvable:$true] %s48
      %54 = dma.hbm_to_vmem [thread:$0]  %s4, 2816, %s49, [#allocation6], 128, 128, 8
    $region21: #{tpu_custom_call.1} parent=1 // pred_fallthru
      _
    // Predicated region
    $region22: #{tpu_custom_call.1} parent=1 // pred_check
      _
    $region23: #{tpu_custom_call.1} parent=1 // pred_check_branch
      %56 = sbr.rel (0) target = $region25
    $region24: #{tpu_custom_call.1} parent=1 // pred_region
      %s58 = ssub.s32 5120, 5120
      %59 = vsyncadd [#allocation9], %s58
      %s60 = sshll.u32 [#allocation8], 4
      %s61 = int_to_ptr.vmem [resolvable:$true] %s60
      %66 = dma.hbm_to_vmem [thread:$0]  %s5, 5120, %s61, [#allocation9], 256, 256, 16
    $region25: #{tpu_custom_call.1} parent=1 // pred_fallthru
      _
    // Predicated region
    $region26: #{tpu_custom_call.1} parent=1 // pred_check
      _
    $region27: #{tpu_custom_call.1} parent=1 // pred_check_branch
      %68 = sbr.rel (0) target = $region29
    $region28: #{tpu_custom_call.1} parent=1 // pred_region
      %69 = dma.done [#allocation3], 512
    $region29: #{tpu_custom_call.1} parent=1 // pred_fallthru
      _
    // Predicated region
    $region30: #{tpu_custom_call.1} parent=1 // pred_check
      _
    $region31: #{tpu_custom_call.1} parent=1 // pred_check_branch
      %71 = sbr.rel (0) target = $region33
    $region32: #{tpu_custom_call.1} parent=1 // pred_region
      %72 = dma.done [#allocation6], 4096
    $region33: #{tpu_custom_call.1} parent=1 // pred_fallthru
      _
    // Predicated region
    $region34: #{tpu_custom_call.1} parent=1 // pred_check
      _
    $region35: #{tpu_custom_call.1} parent=1 // pred_check_branch
      %74 = sbr.rel (0) target = $region37
    $region36: #{tpu_custom_call.1} parent=1 // pred_region
      %75 = dma.done [#allocation6], 2816
    $region37: #{tpu_custom_call.1} parent=1 // pred_fallthru
      _
    // Predicated region
    $region38: #{tpu_custom_call.1} parent=1 // pred_check
      _
    $region39: #{tpu_custom_call.1} parent=1 // pred_check_branch
      %77 = sbr.rel (0) target = $region41
    $region40: #{tpu_custom_call.1} parent=1 // pred_region
      %78 = dma.done [#allocation9], 5120
    $region41: #{tpu_custom_call.1} parent=1 // pred_fallthru
      _
    %v80 = vld [vmem:[#allocation2] sm:$0xff]
    %v81 = vld [vmem:[#allocation2 + $0x8] sm:$0xff]
    %v82 = vld [vmem:[#allocation2 + $0x10] sm:$0xff]
    %v83 = vld [vmem:[#allocation2 + $0x18] sm:$0xff]
    %v84 = vld [vmem:[#allocation5] sm:$0xff]
    %v85 = vld [vmem:[#allocation5 + $0x8] sm:$0xff]
    %v86 = vld [vmem:[#allocation5 + $0x10] sm:$0xff]
    %v87 = vld [vmem:[#allocation5 + $0x18] sm:$0xff]
    %v88 = vld [vmem:[#allocation5 + $0x20] sm:$0xff]
    %v89 = vld [vmem:[#allocation5 + $0x28] sm:$0xff]
    %v90 = vld [vmem:[#allocation5 + $0x30] sm:$0xff]
    %v91 = vld [vmem:[#allocation5 + $0x38] sm:$0xff]
    %v92 = vld [vmem:[#allocation5 + $0x40] sm:$0xff]
    %v93 = vld [vmem:[#allocation5 + $0x48] sm:$0xff]
    %v94 = vld [vmem:[#allocation5 + $0x50] sm:$0xff]
    %v95 = vld [vmem:[#allocation5 + $0x58] sm:$0xff]
    %v96 = vld [vmem:[#allocation5 + $0x60] sm:$0xff]
    %v97 = vld [vmem:[#allocation5 + $0x68] sm:$0xff]
    %v98 = vld [vmem:[#allocation5 + $0x70] sm:$0xff]
    %v99 = vld [vmem:[#allocation5 + $0x78] sm:$0xff]
    %v100 = vld [vmem:[#allocation5 + $0x80] sm:$0xff]
    %v101 = vld [vmem:[#allocation5 + $0x88] sm:$0xff]
    %v102 = vld [vmem:[#allocation5 + $0x90] sm:$0xff]
    %v103 = vld [vmem:[#allocation5 + $0x98] sm:$0xff]
    %v104 = vld [vmem:[#allocation5 + $0xa0] sm:$0xff]
    %v105 = vld [vmem:[#allocation5 + $0xa8] sm:$0xff]
    %v106 = vld [vmem:[#allocation5 + $0xb0] sm:$0xff]
    %v107 = vld [vmem:[#allocation5 + $0xb8] sm:$0xff]
    %v108 = vld [vmem:[#allocation5 + $0xc0] sm:$0xff]
    %v109 = vld [vmem:[#allocation5 + $0xc8] sm:$0xff]
    %v110 = vld [vmem:[#allocation5 + $0xd0] sm:$0xff]
    %v111 = vld [vmem:[#allocation5 + $0xd8] sm:$0xff]
    %v112 = vld [vmem:[#allocation5 + $0xe0] sm:$0xff]
    %v113 = vld [vmem:[#allocation5 + $0xe8] sm:$0xff]
    %v114 = vld [vmem:[#allocation5 + $0xf0] sm:$0xff]
    %v115 = vld [vmem:[#allocation5 + $0xf8] sm:$0xff]
    %v116 = vpack.c.bf16 %v86, %v84
    %v117 = vpack.c.bf16 %v87, %v85
    %v118 = vpack.c.bf16 %v90, %v88
    %v119 = vpack.c.bf16 %v91, %v89
    %v120 = vpack.c.bf16 %v94, %v92
    %v121 = vpack.c.bf16 %v95, %v93
    %v122 = vpack.c.bf16 %v98, %v96
    %v123 = vpack.c.bf16 %v99, %v97
    %v124 = vpack.c.bf16 %v102, %v100
    %v125 = vpack.c.bf16 %v103, %v101
    %v126 = vpack.c.bf16 %v106, %v104
    %v127 = vpack.c.bf16 %v107, %v105
    %v128 = vpack.c.bf16 %v110, %v108
    %v129 = vpack.c.bf16 %v111, %v109
    %v130 = vpack.c.bf16 %v114, %v112
    %v131 = vpack.c.bf16 %v115, %v113
    %v132 = vld [vmem:[%s2] sm:$0x1]
    %v133 = vld [vmem:[%s3] sm:$0x3]
    %v134 = vld [vmem:[#allocation7] sm:$0xff]
    %v135 = vld [vmem:[#allocation7 + $0x8] sm:$0xff]
    %v137 = vlaneseq
    %v138 = vshrl.u32 %v137, 7
    %v139 = vsub.s32 0, %v138
    %v140 = vrot.slane %v132, %v139
    %142 = vmatprep.subr.mxu0 %v85
    %143 = vmatpush1.xpose.msra.mxu0 %v84
    %144 = vmatprep.subr.mxu0 %v87
    %145 = vmatpush1.xpose.msra.mxu0 %v86
    %146 = vmatprep.subr.mxu0 %v89
    %147 = vmatpush1.xpose.msra.mxu0 %v88
    %148 = vmatprep.subr.mxu0 %v91
    %149 = vmatpush1.xpose.msra.mxu0 %v90
    %150 = vmatprep.subr.mxu0 %v93
    %151 = vmatpush1.xpose.msra.mxu0 %v92
    %152 = vmatprep.subr.mxu0 %v95
    %153 = vmatpush1.xpose.msra.mxu0 %v94
    %154 = vmatprep.subr.mxu0 %v97
    %155 = vmatpush1.xpose.msra.mxu0 %v96
    %156 = vmatprep.subr.mxu0 %v99
    %157 = vmatpush1.xpose.msra.mxu0 %v98
    %158 = vmatprep.subr.mxu0 %v101
    %159 = vmatpush1.xpose.msra.mxu0 %v100
    %160 = vmatprep.subr.mxu0 %v103
    %161 = vmatpush1.xpose.msra.mxu0 %v102
    %162 = vmatprep.subr.mxu0 %v105
    %163 = vmatpush1.xpose.msra.mxu0 %v104
    %164 = vmatprep.subr.mxu0 %v107
    %165 = vmatpush1.xpose.msra.mxu0 %v106
    %166 = vmatprep.subr.mxu0 %v109
    %167 = vmatpush1.xpose.msra.mxu0 %v108
    %168 = vmatprep.subr.mxu0 %v111
    %169 = vmatpush1.xpose.msra.mxu0 %v110
    %170 = vmatprep.subr.mxu0 %v113
    %171 = vmatpush1.xpose.msra.mxu0 %v112
    %172 = vmatprep.subr.mxu0 %v115
    %173 = vmatpush1.xpose.msra.mxu0 %v114
    %174 = vmatprep.subr.mxu0 0.0
    %175 = vmatpush1.xpose.msra.mxu0 0.0
    %176 = vmatprep.subr.mxu0 0.0
    %177 = vmatpush1.xpose.msra.mxu0 0.0
    %178 = vmatprep.subr.mxu0 0.0
    %179 = vmatpush1.xpose.msra.mxu0 0.0
    %180 = vmatprep.subr.mxu0 0.0
    %181 = vmatpush1.xpose.msra.mxu0 0.0
    %182 = vmatprep.subr.mxu0 0.0
    %183 = vmatpush1.xpose.msra.mxu0 0.0
    %184 = vmatprep.subr.mxu0 0.0
    %185 = vmatpush1.xpose.msra.mxu0 0.0
    %186 = vmatprep.subr.mxu0 0.0
    %187 = vmatpush1.xpose.msra.mxu0 0.0
    %188 = vmatprep.subr.mxu0 0.0
    %189 = vmatpush1.xpose.msra.mxu0 0.0
    %190 = vmatprep.subr.mxu0 0.0
    %191 = vmatpush1.xpose.msra.mxu0 0.0
    %192 = vmatprep.subr.mxu0 0.0
    %193 = vmatpush1.xpose.msra.mxu0 0.0
    %194 = vmatprep.subr.mxu0 0.0
    %195 = vmatpush1.xpose.msra.mxu0 0.0
    %196 = vmatprep.subr.mxu0 0.0
    %197 = vmatpush1.xpose.msra.mxu0 0.0
    %198 = vmatprep.subr.mxu0 0.0
    %199 = vmatpush1.xpose.msra.mxu0 0.0
    %200 = vmatprep.subr.mxu0 0.0
    %201 = vmatpush1.xpose.msra.mxu0 0.0
    %202 = vmatprep.subr.mxu0 0.0
    %203 = vmatpush1.xpose.msra.mxu0 0.0
    %204 = vmatprep.subr.mxu0 0.0
    %205 = vmatpush1.xpose.msra.mxu0 0.0
    %206 = vmatprep.mubr.f32.mxu0 %v81
    %207 = vmatmul.mubr.f32.gmra.mrb[0].mxu0 %v80
    %v208 = vpop.f32.mrb[0].mxu0
    %v209 = vadd.f32 %v140, %v208
    %v210 = vpop.f32.mrb[0].mxu0
    %211 = vmatprep.mubr.f32.mxu0 %v83
    %212 = vmatmul.mubr.f32.gmra.mrb[0].mxu0 %v82
    %v213 = vpop.f32.mrb[0].mxu0
    %v214 = vadd.f32 %v140, %v213
    %v215 = vpop.f32.mrb[0].mxu0
    %216 = vdwg.mxu0
    %v217 = vxor.u32 %v209, 2147483648
    %v218 = vxor.u32 %v214, 2147483648
    %v219 = vmul.f32 %v217, 1.442695
    %v220 = vpow.pop %v219
    %v221 = vmul.f32 %v218, 1.442695
    %v222 = vpow.pop %v221
    %v223 = vadd.f32 %v220, 1.0
    %v224 = vadd.f32 %v222, 1.0
    %v225 = vrcp.pop %v223
    %v226 = vmul.f32 1.0, %v225
    %v227 = vrcp.pop %v224
    %v228 = vmul.f32 1.0, %v227
    %vm229 = vcmp.lt.f32.partialorder %v134, %v226
    %vm230 = vcmp.lt.f32.partialorder %v135, %v228
    %v231 = vld [vmem:[#allocation8] sm:$0xff]
    %v232 = vld [vmem:[#allocation8 + $0x8] sm:$0xff]
    %v233 = vld [vmem:[#allocation8 + $0x10] sm:$0xff]
    %v234 = vld [vmem:[#allocation8 + $0x18] sm:$0xff]
    %v235 = vsel %vm229, 1, 0
    %v236 = vsel %vm230, 1, 0
    %v237 = vcvt.s32.f32 %v235
    %v238 = vcvt.s32.f32 %v236
    %v239 = vpack.c.bf16 %v238, %v237
    %v241 = vlaneseq
    %v242 = vshrl.u32 %v241, 7
    %v243 = vsub.s32 0, %v242
    %v244 = vrot.slane %v133, %v243
    %v245 = vlaneseq
    %v246 = vshrl.u32 %v245, 7
    %v247 = vsub.s32 1, %v246
    %v248 = vrot.slane %v133, %v247
    %251 = vmatprep.subr.bf16.mxu0 %v117
    %252 = vmatpush1.bf16.msra.mxu0 %v116
    %253 = vmatprep.subr.bf16.mxu0 %v119
    %254 = vmatpush1.bf16.msra.mxu0 %v118
    %255 = vmatprep.subr.bf16.mxu0 %v121
    %256 = vmatpush1.bf16.msra.mxu0 %v120
    %257 = vmatprep.subr.bf16.mxu0 %v123
    %258 = vmatpush1.bf16.msra.mxu0 %v122
    %259 = vmatprep.subr.bf16.mxu0 %v125
    %260 = vmatpush1.bf16.msra.mxu0 %v124
    %261 = vmatprep.subr.bf16.mxu0 %v127
    %262 = vmatpush1.bf16.msra.mxu0 %v126
    %263 = vmatprep.subr.bf16.mxu0 %v129
    %264 = vmatpush1.bf16.msra.mxu0 %v128
    %265 = vmatprep.subr.bf16.mxu0 %v131
    %266 = vmatpush1.bf16.msra.mxu0 %v130
    %267 = vmatprep.subr.bf16.mxu0 0
    %268 = vmatpush1.bf16.msra.mxu0 0
    %269 = vmatprep.subr.bf16.mxu0 0
    %270 = vmatpush1.bf16.msra.mxu0 0
    %271 = vmatprep.subr.bf16.mxu0 0
    %272 = vmatpush1.bf16.msra.mxu0 0
    %273 = vmatprep.subr.bf16.mxu0 0
    %274 = vmatpush1.bf16.msra.mxu0 0
    %275 = vmatprep.subr.bf16.mxu0 0
    %276 = vmatpush1.bf16.msra.mxu0 0
    %277 = vmatprep.subr.bf16.mxu0 0
    %278 = vmatpush1.bf16.msra.mxu0 0
    %279 = vmatprep.subr.bf16.mxu0 0
    %280 = vmatpush1.bf16.msra.mxu0 0
    %281 = vmatprep.subr.bf16.mxu0 0
    %282 = vmatpush1.bf16.msra.mxu0 0
    %283 = vmatprep.mubr.bf16.mxu0 0
    %284 = vmatmul.mubr.bf16.gmra.mrb[0].mxu0 %v239
    %v285 = vpop.f32.mrb[0].mxu0
    %v286 = vadd.f32 %v244, %v285
    %v287 = vpop.f32.mrb[0].mxu0
    %v288 = vadd.f32 %v248, %v287
    %v289 = vpop.f32.mrb[0].mxu0
    %v290 = vadd.f32 %v244, %v289
    %v291 = vpop.f32.mrb[0].mxu0
    %v292 = vadd.f32 %v248, %v291
    %293 = vdwg.mxu0
    %v294 = vxor.u32 %v286, 2147483648
    %v295 = vxor.u32 %v288, 2147483648
    %v296 = vxor.u32 %v290, 2147483648
    %v297 = vxor.u32 %v292, 2147483648
    %v298 = vmul.f32 %v294, 1.442695
    %v299 = vpow.pop %v298
    %v300 = vmul.f32 %v295, 1.442695
    %v301 = vpow.pop %v300
    %v302 = vmul.f32 %v296, 1.442695
    %v303 = vpow.pop %v302
    %v304 = vmul.f32 %v297, 1.442695
    %v305 = vpow.pop %v304
    %v306 = vadd.f32 %v299, 1.0
    %v307 = vadd.f32 %v301, 1.0
    %v308 = vadd.f32 %v303, 1.0
    %v309 = vadd.f32 %v305, 1.0
    %v310 = vrcp.pop %v306
    %v311 = vmul.f32 1.0, %v310
    %v312 = vrcp.pop %v307
    %v313 = vmul.f32 1.0, %v312
    %v314 = vrcp.pop %v308
    %v315 = vmul.f32 1.0, %v314
    %v316 = vrcp.pop %v309
    %v317 = vmul.f32 1.0, %v316
    %vm318 = vcmp.lt.f32.partialorder %v231, %v311
    %vm319 = vcmp.lt.f32.partialorder %v232, %v313
    %vm320 = vcmp.lt.f32.partialorder %v233, %v315
    %vm321 = vcmp.lt.f32.partialorder %v234, %v317
    %v322 = vsel %vm318, 1, 0
    %v323 = vsel %vm319, 1, 0
    %v324 = vsel %vm320, 1, 0
    %v325 = vsel %vm321, 1, 0
    %v326 = vcvt.s32.f32 %v322
    %v327 = vcvt.s32.f32 %v323
    %v328 = vcvt.s32.f32 %v324
    %v329 = vcvt.s32.f32 %v325
    %v330 = vpack.c.bf16 %v328, %v326
    %v331 = vpack.c.bf16 %v329, %v327
    %s332 = scalar_lea.vmem [#allocation7], 16
    %v333 = vld [vmem:[%s332] sm:$0xff]
    %v334 = vld [vmem:[%s332 + $0x8] sm:$0xff]
    %335 = vmatprep.subr.bf16.mxu0 %v117
    %336 = vmatpush1.bf16.xpose.msra.mxu0 %v116
    %337 = vmatprep.subr.bf16.mxu0 %v119
    %338 = vmatpush1.bf16.xpose.msra.mxu0 %v118
    %339 = vmatprep.subr.bf16.mxu0 %v121
    %340 = vmatpush1.bf16.xpose.msra.mxu0 %v120
    %341 = vmatprep.subr.bf16.mxu0 %v123
    %342 = vmatpush1.bf16.xpose.msra.mxu0 %v122
    %343 = vmatprep.subr.bf16.mxu0 %v125
    %344 = vmatpush1.bf16.xpose.msra.mxu0 %v124
    %345 = vmatprep.subr.bf16.mxu0 %v127
    %346 = vmatpush1.bf16.xpose.msra.mxu0 %v126
    %347 = vmatprep.subr.bf16.mxu0 %v129
    %348 = vmatpush1.bf16.xpose.msra.mxu0 %v128
    %349 = vmatprep.subr.bf16.mxu0 %v131
    %350 = vmatpush1.bf16.xpose.msra.mxu0 %v130
    %351 = vmatprep.subr.bf16.mxu0 0
    %352 = vmatpush1.bf16.xpose.msra.mxu0 0
    %353 = vmatprep.subr.bf16.mxu0 0
    %354 = vmatpush1.bf16.xpose.msra.mxu0 0
    %355 = vmatprep.subr.bf16.mxu0 0
    %356 = vmatpush1.bf16.xpose.msra.mxu0 0
    %357 = vmatprep.subr.bf16.mxu0 0
    %358 = vmatpush1.bf16.xpose.msra.mxu0 0
    %359 = vmatprep.subr.bf16.mxu0 0
    %360 = vmatpush1.bf16.xpose.msra.mxu0 0
    %361 = vmatprep.subr.bf16.mxu0 0
    %362 = vmatpush1.bf16.xpose.msra.mxu0 0
    %363 = vmatprep.subr.bf16.mxu0 0
    %364 = vmatpush1.bf16.xpose.msra.mxu0 0
    %365 = vmatprep.subr.bf16.mxu0 0
    %366 = vmatpush1.bf16.xpose.msra.mxu0 0
    %367 = vmatprep.mubr.bf16.mxu0 %v331
    %368 = vmatmul.mubr.bf16.gmra.mrb[0].mxu0 %v330
    %v369 = vpop.f32.mrb[0].mxu0
    %v370 = vadd.f32 %v140, %v369
    %v371 = vpop.f32.mrb[0].mxu0
    %v372 = vpop.f32.mrb[0].mxu0
    %v373 = vadd.f32 %v140, %v372
    %v374 = vpop.f32.mrb[0].mxu0
    %375 = vdwg.mxu0
    %v376 = vxor.u32 %v370, 2147483648
    %v377 = vxor.u32 %v373, 2147483648
    %v378 = vmul.f32 %v376, 1.442695
    %v379 = vpow.pop %v378
    %v380 = vmul.f32 %v377, 1.442695
    %v381 = vpow.pop %v380
    %v382 = vadd.f32 %v379, 1.0
    %v383 = vadd.f32 %v381, 1.0
    %v384 = vrcp.pop %v382
    %v385 = vmul.f32 1.0, %v384
    %v386 = vrcp.pop %v383
    %v387 = vmul.f32 1.0, %v386
    %vm388 = vcmp.lt.f32.partialorder %v333, %v385
    %vm389 = vcmp.lt.f32.partialorder %v334, %v387
    %s390 = scalar_lea.vmem [#allocation8], 32
    %v391 = vld [vmem:[%s390] sm:$0xff]
    %v392 = vld [vmem:[%s390 + $0x8] sm:$0xff]
    %v393 = vld [vmem:[%s390 + $0x10] sm:$0xff]
    %v394 = vld [vmem:[%s390 + $0x18] sm:$0xff]
    %v395 = vsel %vm388, 1, 0
    %v396 = vsel %vm389, 1, 0
    %v397 = vcvt.s32.f32 %v395
    %v398 = vcvt.s32.f32 %v396
    %v399 = vpack.c.bf16 %v398, %v397
    %400 = vmatprep.subr.bf16.mxu0 %v117
    %401 = vmatpush1.bf16.msra.mxu0 %v116
    %402 = vmatprep.subr.bf16.mxu0 %v119
    %403 = vmatpush1.bf16.msra.mxu0 %v118
    %404 = vmatprep.subr.bf16.mxu0 %v121
    %405 = vmatpush1.bf16.msra.mxu0 %v120
    %406 = vmatprep.subr.bf16.mxu0 %v123
    %407 = vmatpush1.bf16.msra.mxu0 %v122
    %408 = vmatprep.subr.bf16.mxu0 %v125
    %409 = vmatpush1.bf16.msra.mxu0 %v124
    %410 = vmatprep.subr.bf16.mxu0 %v127
    %411 = vmatpush1.bf16.msra.mxu0 %v126
    %412 = vmatprep.subr.bf16.mxu0 %v129
    %413 = vmatpush1.bf16.msra.mxu0 %v128
    %414 = vmatprep.subr.bf16.mxu0 %v131
    %415 = vmatpush1.bf16.msra.mxu0 %v130
    %416 = vmatprep.subr.bf16.mxu0 0
    %417 = vmatpush1.bf16.msra.mxu0 0
    %418 = vmatprep.subr.bf16.mxu0 0
    %419 = vmatpush1.bf16.msra.mxu0 0
    %420 = vmatprep.subr.bf16.mxu0 0
    %421 = vmatpush1.bf16.msra.mxu0 0
    %422 = vmatprep.subr.bf16.mxu0 0
    %423 = vmatpush1.bf16.msra.mxu0 0
    %424 = vmatprep.subr.bf16.mxu0 0
    %425 = vmatpush1.bf16.msra.mxu0 0
    %426 = vmatprep.subr.bf16.mxu0 0
    %427 = vmatpush1.bf16.msra.mxu0 0
    %428 = vmatprep.subr.bf16.mxu0 0
    %429 = vmatpush1.bf16.msra.mxu0 0
    %430 = vmatprep.subr.bf16.mxu0 0
    %431 = vmatpush1.bf16.msra.mxu0 0
    %432 = vmatprep.mubr.bf16.mxu0 0
    %433 = vmatmul.mubr.bf16.gmra.mrb[0].mxu0 %v399
    %v434 = vpop.f32.mrb[0].mxu0
    %v435 = vadd.f32 %v244, %v434
    %v436 = vpop.f32.mrb[0].mxu0
    %v437 = vadd.f32 %v248, %v436
    %v438 = vpop.f32.mrb[0].mxu0
    %v439 = vadd.f32 %v244, %v438
    %v440 = vpop.f32.mrb[0].mxu0
    %v441 = vadd.f32 %v248, %v440
    %442 = vdwg.mxu0
    %v443 = vxor.u32 %v435, 2147483648
    %v444 = vxor.u32 %v437, 2147483648
    %v445 = vxor.u32 %v439, 2147483648
    %v446 = vxor.u32 %v441, 2147483648
    %v447 = vmul.f32 %v443, 1.442695
    %v448 = vpow.pop %v447
    %v449 = vmul.f32 %v444, 1.442695
    %v450 = vpow.pop %v449
    %v451 = vmul.f32 %v445, 1.442695
    %v452 = vpow.pop %v451
    %v453 = vmul.f32 %v446, 1.442695
    %v454 = vpow.pop %v453
    %v455 = vadd.f32 %v448, 1.0
    %v456 = vadd.f32 %v450, 1.0
    %v457 = vadd.f32 %v452, 1.0
    %v458 = vadd.f32 %v454, 1.0
    %v459 = vrcp.pop %v455
    %v460 = vmul.f32 1.0, %v459
    %v461 = vrcp.pop %v456
    %v462 = vmul.f32 1.0, %v461
    %v463 = vrcp.pop %v457
    %v464 = vmul.f32 1.0, %v463
    %v465 = vrcp.pop %v458
    %v466 = vmul.f32 1.0, %v465
    %vm467 = vcmp.lt.f32.partialorder %v391, %v460
    %vm468 = vcmp.lt.f32.partialorder %v392, %v462
    %vm469 = vcmp.lt.f32.partialorder %v393, %v464
    %vm470 = vcmp.lt.f32.partialorder %v394, %v466
    %v471 = vsel %vm467, 1, 0
    %v472 = vsel %vm468, 1, 0
    %v473 = vsel %vm469, 1, 0
    %v474 = vsel %vm470, 1, 0
    %v475 = vcvt.s32.f32 %v471
    %v476 = vcvt.s32.f32 %v472
    %v477 = vcvt.s32.f32 %v473
    %v478 = vcvt.s32.f32 %v474
    %v479 = vpack.c.bf16 %v477, %v475
    %v480 = vpack.c.bf16 %v478, %v476
    %s481 = scalar_lea.vmem [#allocation7], 32
    %v482 = vld [vmem:[%s481] sm:$0xff]
    %v483 = vld [vmem:[%s481 + $0x8] sm:$0xff]
    %484 = vmatprep.subr.bf16.mxu0 %v117
    %485 = vmatpush1.bf16.xpose.msra.mxu0 %v116
    %486 = vmatprep.subr.bf16.mxu0 %v119
    %487 = vmatpush1.bf16.xpose.msra.mxu0 %v118
    %488 = vmatprep.subr.bf16.mxu0 %v121
    %489 = vmatpush1.bf16.xpose.msra.mxu0 %v120
    %490 = vmatprep.subr.bf16.mxu0 %v123
    %491 = vmatpush1.bf16.xpose.msra.mxu0 %v122
    %492 = vmatprep.subr.bf16.mxu0 %v125
    %493 = vmatpush1.bf16.xpose.msra.mxu0 %v124
    %494 = vmatprep.subr.bf16.mxu0 %v127
    %495 = vmatpush1.bf16.xpose.msra.mxu0 %v126
    %496 = vmatprep.subr.bf16.mxu0 %v129
    %497 = vmatpush1.bf16.xpose.msra.mxu0 %v128
    %498 = vmatprep.subr.bf16.mxu0 %v131
    %499 = vmatpush1.bf16.xpose.msra.mxu0 %v130
    %500 = vmatprep.subr.bf16.mxu0 0
    %501 = vmatpush1.bf16.xpose.msra.mxu0 0
    %502 = vmatprep.subr.bf16.mxu0 0
    %503 = vmatpush1.bf16.xpose.msra.mxu0 0
    %504 = vmatprep.subr.bf16.mxu0 0
    %505 = vmatpush1.bf16.xpose.msra.mxu0 0
    %506 = vmatprep.subr.bf16.mxu0 0
    %507 = vmatpush1.bf16.xpose.msra.mxu0 0
    %508 = vmatprep.subr.bf16.mxu0 0
    %509 = vmatpush1.bf16.xpose.msra.mxu0 0
    %510 = vmatprep.subr.bf16.mxu0 0
    %511 = vmatpush1.bf16.xpose.msra.mxu0 0
    %512 = vmatprep.subr.bf16.mxu0 0
    %513 = vmatpush1.bf16.xpose.msra.mxu0 0
    %514 = vmatprep.subr.bf16.mxu0 0
    %515 = vmatpush1.bf16.xpose.msra.mxu0 0
    %516 = vmatprep.mubr.bf16.mxu0 %v480
    %517 = vmatmul.mubr.bf16.gmra.mrb[0].mxu0 %v479
    %v518 = vpop.f32.mrb[0].mxu0
    %v519 = vadd.f32 %v140, %v518
    %v520 = vpop.f32.mrb[0].mxu0
    %v521 = vpop.f32.mrb[0].mxu0
    %v522 = vadd.f32 %v140, %v521
    %v523 = vpop.f32.mrb[0].mxu0
    %524 = vdwg.mxu0
    %v525 = vxor.u32 %v519, 2147483648
    %v526 = vxor.u32 %v522, 2147483648
    %v527 = vmul.f32 %v525, 1.442695
    %v528 = vpow.pop %v527
    %v529 = vmul.f32 %v526, 1.442695
    %v530 = vpow.pop %v529
    %v531 = vadd.f32 %v528, 1.0
    %v532 = vadd.f32 %v530, 1.0
    %v533 = vrcp.pop %v531
    %v534 = vmul.f32 1.0, %v533
    %v535 = vrcp.pop %v532
    %v536 = vmul.f32 1.0, %v535
    %vm537 = vcmp.lt.f32.partialorder %v482, %v534
    %vm538 = vcmp.lt.f32.partialorder %v483, %v536
    %s539 = scalar_lea.vmem [#allocation8], 64
    %v540 = vld [vmem:[%s539] sm:$0xff]
    %v541 = vld [vmem:[%s539 + $0x8] sm:$0xff]
    %v542 = vld [vmem:[%s539 + $0x10] sm:$0xff]
    %v543 = vld [vmem:[%s539 + $0x18] sm:$0xff]
    %v544 = vsel %vm537, 1, 0
    %v545 = vsel %vm538, 1, 0
    %v546 = vcvt.s32.f32 %v544
    %v547 = vcvt.s32.f32 %v545
    %v548 = vpack.c.bf16 %v547, %v546
    %549 = vmatprep.subr.bf16.mxu0 %v117
    %550 = vmatpush1.bf16.msra.mxu0 %v116
    %551 = vmatprep.subr.bf16.mxu0 %v119
    %552 = vmatpush1.bf16.msra.mxu0 %v118
    %553 = vmatprep.subr.bf16.mxu0 %v121
    %554 = vmatpush1.bf16.msra.mxu0 %v120
    %555 = vmatprep.subr.bf16.mxu0 %v123
    %556 = vmatpush1.bf16.msra.mxu0 %v122
    %557 = vmatprep.subr.bf16.mxu0 %v125
    %558 = vmatpush1.bf16.msra.mxu0 %v124
    %559 = vmatprep.subr.bf16.mxu0 %v127
    %560 = vmatpush1.bf16.msra.mxu0 %v126
    %561 = vmatprep.subr.bf16.mxu0 %v129
    %562 = vmatpush1.bf16.msra.mxu0 %v128
    %563 = vmatprep.subr.bf16.mxu0 %v131
    %564 = vmatpush1.bf16.msra.mxu0 %v130
    %565 = vmatprep.subr.bf16.mxu0 0
    %566 = vmatpush1.bf16.msra.mxu0 0
    %567 = vmatprep.subr.bf16.mxu0 0
    %568 = vmatpush1.bf16.msra.mxu0 0
    %569 = vmatprep.subr.bf16.mxu0 0
    %570 = vmatpush1.bf16.msra.mxu0 0
    %571 = vmatprep.subr.bf16.mxu0 0
    %572 = vmatpush1.bf16.msra.mxu0 0
    %573 = vmatprep.subr.bf16.mxu0 0
    %574 = vmatpush1.bf16.msra.mxu0 0
    %575 = vmatprep.subr.bf16.mxu0 0
    %576 = vmatpush1.bf16.msra.mxu0 0
    %577 = vmatprep.subr.bf16.mxu0 0
    %578 = vmatpush1.bf16.msra.mxu0 0
    %579 = vmatprep.subr.bf16.mxu0 0
    %580 = vmatpush1.bf16.msra.mxu0 0
    %581 = vmatprep.mubr.bf16.mxu0 0
    %582 = vmatmul.mubr.bf16.gmra.mrb[0].mxu0 %v548
    %v583 = vpop.f32.mrb[0].mxu0
    %v584 = vadd.f32 %v244, %v583
    %v585 = vpop.f32.mrb[0].mxu0
    %v586 = vadd.f32 %v248, %v585
    %v587 = vpop.f32.mrb[0].mxu0
    %v588 = vadd.f32 %v244, %v587
    %v589 = vpop.f32.mrb[0].mxu0
    %v590 = vadd.f32 %v248, %v589
    %591 = vdwg.mxu0
    %v592 = vxor.u32 %v584, 2147483648
    %v593 = vxor.u32 %v586, 2147483648
    %v594 = vxor.u32 %v588, 2147483648
    %v595 = vxor.u32 %v590, 2147483648
    %v596 = vmul.f32 %v592, 1.442695
    %v597 = vpow.pop %v596
    %v598 = vmul.f32 %v593, 1.442695
    %v599 = vpow.pop %v598
    %v600 = vmul.f32 %v594, 1.442695
    %v601 = vpow.pop %v600
    %v602 = vmul.f32 %v595, 1.442695
    %v603 = vpow.pop %v602
    %v604 = vadd.f32 %v597, 1.0
    %v605 = vadd.f32 %v599, 1.0
    %v606 = vadd.f32 %v601, 1.0
    %v607 = vadd.f32 %v603, 1.0
    %v608 = vrcp.pop %v604
    %v609 = vmul.f32 1.0, %v608
    %v610 = vrcp.pop %v605
    %v611 = vmul.f32 1.0, %v610
    %v612 = vrcp.pop %v606
    %v613 = vmul.f32 1.0, %v612
    %v614 = vrcp.pop %v607
    %v615 = vmul.f32 1.0, %v614
    %vm616 = vcmp.lt.f32.partialorder %v540, %v609
    %vm617 = vcmp.lt.f32.partialorder %v541, %v611
    %vm618 = vcmp.lt.f32.partialorder %v542, %v613
    %vm619 = vcmp.lt.f32.partialorder %v543, %v615
    %v620 = vsel %vm616, 1, 0
    %v621 = vsel %vm617, 1, 0
    %v622 = vsel %vm618, 1, 0
    %v623 = vsel %vm619, 1, 0
    %v624 = vcvt.s32.f32 %v620
    %v625 = vcvt.s32.f32 %v621
    %v626 = vcvt.s32.f32 %v622
    %v627 = vcvt.s32.f32 %v623
    %v628 = vpack.c.bf16 %v626, %v624
    %v629 = vpack.c.bf16 %v627, %v625
    %s630 = scalar_lea.vmem [#allocation7], 48
    %v631 = vld [vmem:[%s630] sm:$0xff]
    %v632 = vld [vmem:[%s630 + $0x8] sm:$0xff]
    %633 = vmatprep.subr.bf16.mxu0 %v117
    %634 = vmatpush1.bf16.xpose.msra.mxu0 %v116
    %635 = vmatprep.subr.bf16.mxu0 %v119
    %636 = vmatpush1.bf16.xpose.msra.mxu0 %v118
    %637 = vmatprep.subr.bf16.mxu0 %v121
    %638 = vmatpush1.bf16.xpose.msra.mxu0 %v120
    %639 = vmatprep.subr.bf16.mxu0 %v123
    %640 = vmatpush1.bf16.xpose.msra.mxu0 %v122
    %641 = vmatprep.subr.bf16.mxu0 %v125
    %642 = vmatpush1.bf16.xpose.msra.mxu0 %v124
    %643 = vmatprep.subr.bf16.mxu0 %v127
    %644 = vmatpush1.bf16.xpose.msra.mxu0 %v126
    %645 = vmatprep.subr.bf16.mxu0 %v129
    %646 = vmatpush1.bf16.xpose.msra.mxu0 %v128
    %647 = vmatprep.subr.bf16.mxu0 %v131
    %648 = vmatpush1.bf16.xpose.msra.mxu0 %v130
    %649 = vmatprep.subr.bf16.mxu0 0
    %650 = vmatpush1.bf16.xpose.msra.mxu0 0
    %651 = vmatprep.subr.bf16.mxu0 0
    %652 = vmatpush1.bf16.xpose.msra.mxu0 0
    %653 = vmatprep.subr.bf16.mxu0 0
    %654 = vmatpush1.bf16.xpose.msra.mxu0 0
    %655 = vmatprep.subr.bf16.mxu0 0
    %656 = vmatpush1.bf16.xpose.msra.mxu0 0
    %657 = vmatprep.subr.bf16.mxu0 0
    %658 = vmatpush1.bf16.xpose.msra.mxu0 0
    %659 = vmatprep.subr.bf16.mxu0 0
    %660 = vmatpush1.bf16.xpose.msra.mxu0 0
    %661 = vmatprep.subr.bf16.mxu0 0
    %662 = vmatpush1.bf16.xpose.msra.mxu0 0
    %663 = vmatprep.subr.bf16.mxu0 0
    %664 = vmatpush1.bf16.xpose.msra.mxu0 0
    %665 = vmatprep.mubr.bf16.mxu0 %v629
    %666 = vmatmul.mubr.bf16.gmra.mrb[0].mxu0 %v628
    %v667 = vpop.f32.mrb[0].mxu0
    %v668 = vadd.f32 %v140, %v667
    %v669 = vpop.f32.mrb[0].mxu0
    %v670 = vpop.f32.mrb[0].mxu0
    %v671 = vadd.f32 %v140, %v670
    %v672 = vpop.f32.mrb[0].mxu0
    %673 = vdwg.mxu0
    %v674 = vxor.u32 %v668, 2147483648
    %v675 = vxor.u32 %v671, 2147483648
    %v676 = vmul.f32 %v674, 1.442695
    %v677 = vpow.pop %v676
    %v678 = vmul.f32 %v675, 1.442695
    %v679 = vpow.pop %v678
    %v680 = vadd.f32 %v677, 1.0
    %v681 = vadd.f32 %v679, 1.0
    %v682 = vrcp.pop %v680
    %v683 = vmul.f32 1.0, %v682
    %v684 = vrcp.pop %v681
    %v685 = vmul.f32 1.0, %v684
    %vm686 = vcmp.lt.f32.partialorder %v631, %v683
    %vm687 = vcmp.lt.f32.partialorder %v632, %v685
    %s688 = scalar_lea.vmem [#allocation8], 96
    %v689 = vld [vmem:[%s688] sm:$0xff]
    %v690 = vld [vmem:[%s688 + $0x8] sm:$0xff]
    %v691 = vld [vmem:[%s688 + $0x10] sm:$0xff]
    %v692 = vld [vmem:[%s688 + $0x18] sm:$0xff]
    %v693 = vsel %vm686, 1, 0
    %v694 = vsel %vm687, 1, 0
    %v695 = vcvt.s32.f32 %v693
    %v696 = vcvt.s32.f32 %v694
    %v697 = vpack.c.bf16 %v696, %v695
    %698 = vmatprep.subr.bf16.mxu0 %v117
    %699 = vmatpush1.bf16.msra.mxu0 %v116
    %700 = vmatprep.subr.bf16.mxu0 %v119
    %701 = vmatpush1.bf16.msra.mxu0 %v118
    %702 = vmatprep.subr.bf16.mxu0 %v121
    %703 = vmatpush1.bf16.msra.mxu0 %v120
    %704 = vmatprep.subr.bf16.mxu0 %v123
    %705 = vmatpush1.bf16.msra.mxu0 %v122
    %706 = vmatprep.subr.bf16.mxu0 %v125
    %707 = vmatpush1.bf16.msra.mxu0 %v124
    %708 = vmatprep.subr.bf16.mxu0 %v127
    %709 = vmatpush1.bf16.msra.mxu0 %v126
    %710 = vmatprep.subr.bf16.mxu0 %v129
    %711 = vmatpush1.bf16.msra.mxu0 %v128
    %712 = vmatprep.subr.bf16.mxu0 %v131
    %713 = vmatpush1.bf16.msra.mxu0 %v130
    %714 = vmatprep.subr.bf16.mxu0 0
    %715 = vmatpush1.bf16.msra.mxu0 0
    %716 = vmatprep.subr.bf16.mxu0 0
    %717 = vmatpush1.bf16.msra.mxu0 0
    %718 = vmatprep.subr.bf16.mxu0 0
    %719 = vmatpush1.bf16.msra.mxu0 0
    %720 = vmatprep.subr.bf16.mxu0 0
    %721 = vmatpush1.bf16.msra.mxu0 0
    %722 = vmatprep.subr.bf16.mxu0 0
    %723 = vmatpush1.bf16.msra.mxu0 0
    %724 = vmatprep.subr.bf16.mxu0 0
    %725 = vmatpush1.bf16.msra.mxu0 0
    %726 = vmatprep.subr.bf16.mxu0 0
    %727 = vmatpush1.bf16.msra.mxu0 0
    %728 = vmatprep.subr.bf16.mxu0 0
    %729 = vmatpush1.bf16.msra.mxu0 0
    %730 = vmatprep.mubr.bf16.mxu0 0
    %731 = vmatmul.mubr.bf16.gmra.mrb[0].mxu0 %v697
    %v732 = vpop.f32.mrb[0].mxu0
    %v733 = vadd.f32 %v244, %v732
    %v734 = vpop.f32.mrb[0].mxu0
    %v735 = vadd.f32 %v248, %v734
    %v736 = vpop.f32.mrb[0].mxu0
    %v737 = vadd.f32 %v244, %v736
    %v738 = vpop.f32.mrb[0].mxu0
    %v739 = vadd.f32 %v248, %v738
    %740 = vdwg.mxu0
    %v741 = vxor.u32 %v733, 2147483648
    %v742 = vxor.u32 %v735, 2147483648
    %v743 = vxor.u32 %v737, 2147483648
    %v744 = vxor.u32 %v739, 2147483648
    %v745 = vmul.f32 %v741, 1.442695
    %v746 = vpow.pop %v745
    %v747 = vmul.f32 %v742, 1.442695
    %v748 = vpow.pop %v747
    %v749 = vmul.f32 %v743, 1.442695
    %v750 = vpow.pop %v749
    %v751 = vmul.f32 %v744, 1.442695
    %v752 = vpow.pop %v751
    %v753 = vadd.f32 %v746, 1.0
    %v754 = vadd.f32 %v748, 1.0
    %v755 = vadd.f32 %v750, 1.0
    %v756 = vadd.f32 %v752, 1.0
    %v757 = vrcp.pop %v753
    %v758 = vmul.f32 1.0, %v757
    %v759 = vrcp.pop %v754
    %v760 = vmul.f32 1.0, %v759
    %v761 = vrcp.pop %v755
    %v762 = vmul.f32 1.0, %v761
    %v763 = vrcp.pop %v756
    %v764 = vmul.f32 1.0, %v763
    %vm765 = vcmp.lt.f32.partialorder %v689, %v758
    %vm766 = vcmp.lt.f32.partialorder %v690, %v760
    %vm767 = vcmp.lt.f32.partialorder %v691, %v762
    %vm768 = vcmp.lt.f32.partialorder %v692, %v764
    %v769 = vsel %vm765, 1, 0
    %v770 = vsel %vm766, 1, 0
    %v771 = vsel %vm767, 1, 0
    %v772 = vsel %vm768, 1, 0
    %v773 = vcvt.s32.f32 %v769
    %v774 = vcvt.s32.f32 %v770
    %v775 = vcvt.s32.f32 %v771
    %v776 = vcvt.s32.f32 %v772
    %v777 = vpack.c.bf16 %v775, %v773
    %v778 = vpack.c.bf16 %v776, %v774
    %s779 = scalar_lea.vmem [#allocation7], 64
    %v780 = vld [vmem:[%s779] sm:$0xff]
    %v781 = vld [vmem:[%s779 + $0x8] sm:$0xff]
    %782 = vmatprep.subr.bf16.mxu0 %v117
    %783 = vmatpush1.bf16.xpose.msra.mxu0 %v116
    %784 = vmatprep.subr.bf16.mxu0 %v119
    %785 = vmatpush1.bf16.xpose.msra.mxu0 %v118
    %786 = vmatprep.subr.bf16.mxu0 %v121
    %787 = vmatpush1.bf16.xpose.msra.mxu0 %v120
    %788 = vmatprep.subr.bf16.mxu0 %v123
    %789 = vmatpush1.bf16.xpose.msra.mxu0 %v122
    %790 = vmatprep.subr.bf16.mxu0 %v125
    %791 = vmatpush1.bf16.xpose.msra.mxu0 %v124
    %792 = vmatprep.subr.bf16.mxu0 %v127
    %793 = vmatpush1.bf16.xpose.msra.mxu0 %v126
    %794 = vmatprep.subr.bf16.mxu0 %v129
    %795 = vmatpush1.bf16.xpose.msra.mxu0 %v128
    %796 = vmatprep.subr.bf16.mxu0 %v131
    %797 = vmatpush1.bf16.xpose.msra.mxu0 %v130
    %798 = vmatprep.subr.bf16.mxu0 0
    %799 = vmatpush1.bf16.xpose.msra.mxu0 0
    %800 = vmatprep.subr.bf16.mxu0 0
    %801 = vmatpush1.bf16.xpose.msra.mxu0 0
    %802 = vmatprep.subr.bf16.mxu0 0
    %803 = vmatpush1.bf16.xpose.msra.mxu0 0
    %804 = vmatprep.subr.bf16.mxu0 0
    %805 = vmatpush1.bf16.xpose.msra.mxu0 0
    %806 = vmatprep.subr.bf16.mxu0 0
    %807 = vmatpush1.bf16.xpose.msra.mxu0 0
    %808 = vmatprep.subr.bf16.mxu0 0
    %809 = vmatpush1.bf16.xpose.msra.mxu0 0
    %810 = vmatprep.subr.bf16.mxu0 0
    %811 = vmatpush1.bf16.xpose.msra.mxu0 0
    %812 = vmatprep.subr.bf16.mxu0 0
    %813 = vmatpush1.bf16.xpose.msra.mxu0 0
    %814 = vmatprep.mubr.bf16.mxu0 %v778
    %815 = vmatmul.mubr.bf16.gmra.mrb[0].mxu0 %v777
    %v816 = vpop.f32.mrb[0].mxu0
    %v817 = vadd.f32 %v140, %v816
    %v818 = vpop.f32.mrb[0].mxu0
    %v819 = vpop.f32.mrb[0].mxu0
    %v820 = vadd.f32 %v140, %v819
    %v821 = vpop.f32.mrb[0].mxu0
    %822 = vdwg.mxu0
    %v823 = vxor.u32 %v817, 2147483648
    %v824 = vxor.u32 %v820, 2147483648
    %v825 = vmul.f32 %v823, 1.442695
    %v826 = vpow.pop %v825
    %v827 = vmul.f32 %v824, 1.442695
    %v828 = vpow.pop %v827
    %v829 = vadd.f32 %v826, 1.0
    %v830 = vadd.f32 %v828, 1.0
    %v831 = vrcp.pop %v829
    %v832 = vmul.f32 1.0, %v831
    %v833 = vrcp.pop %v830
    %v834 = vmul.f32 1.0, %v833
    %vm835 = vcmp.lt.f32.partialorder %v780, %v832
    %vm836 = vcmp.lt.f32.partialorder %v781, %v834
    %s837 = scalar_lea.vmem [#allocation8], 128
    %v838 = vld [vmem:[%s837] sm:$0xff]
    %v839 = vld [vmem:[%s837 + $0x8] sm:$0xff]
    %v840 = vld [vmem:[%s837 + $0x10] sm:$0xff]
    %v841 = vld [vmem:[%s837 + $0x18] sm:$0xff]
    %v842 = vsel %vm835, 1, 0
    %v843 = vsel %vm836, 1, 0
    %v844 = vcvt.s32.f32 %v842
    %v845 = vcvt.s32.f32 %v843
    %v846 = vpack.c.bf16 %v845, %v844
    %847 = vmatprep.subr.bf16.mxu0 %v117
    %848 = vmatpush1.bf16.msra.mxu0 %v116
    %849 = vmatprep.subr.bf16.mxu0 %v119
    %850 = vmatpush1.bf16.msra.mxu0 %v118
    %851 = vmatprep.subr.bf16.mxu0 %v121
    %852 = vmatpush1.bf16.msra.mxu0 %v120
    %853 = vmatprep.subr.bf16.mxu0 %v123
    %854 = vmatpush1.bf16.msra.mxu0 %v122
    %855 = vmatprep.subr.bf16.mxu0 %v125
    %856 = vmatpush1.bf16.msra.mxu0 %v124
    %857 = vmatprep.subr.bf16.mxu0 %v127
    %858 = vmatpush1.bf16.msra.mxu0 %v126
    %859 = vmatprep.subr.bf16.mxu0 %v129
    %860 = vmatpush1.bf16.msra.mxu0 %v128
    %861 = vmatprep.subr.bf16.mxu0 %v131
    %862 = vmatpush1.bf16.msra.mxu0 %v130
    %863 = vmatprep.subr.bf16.mxu0 0
    %864 = vmatpush1.bf16.msra.mxu0 0
    %865 = vmatprep.subr.bf16.mxu0 0
    %866 = vmatpush1.bf16.msra.mxu0 0
    %867 = vmatprep.subr.bf16.mxu0 0
    %868 = vmatpush1.bf16.msra.mxu0 0
    %869 = vmatprep.subr.bf16.mxu0 0
    %870 = vmatpush1.bf16.msra.mxu0 0
    %871 = vmatprep.subr.bf16.mxu0 0
    %872 = vmatpush1.bf16.msra.mxu0 0
    %873 = vmatprep.subr.bf16.mxu0 0
    %874 = vmatpush1.bf16.msra.mxu0 0
    %875 = vmatprep.subr.bf16.mxu0 0
    %876 = vmatpush1.bf16.msra.mxu0 0
    %877 = vmatprep.subr.bf16.mxu0 0
    %878 = vmatpush1.bf16.msra.mxu0 0
    %879 = vmatprep.mubr.bf16.mxu0 0
    %880 = vmatmul.mubr.bf16.gmra.mrb[0].mxu0 %v846
    %v881 = vpop.f32.mrb[0].mxu0
    %v882 = vadd.f32 %v244, %v881
    %v883 = vpop.f32.mrb[0].mxu0
    %v884 = vadd.f32 %v248, %v883
    %v885 = vpop.f32.mrb[0].mxu0
    %v886 = vadd.f32 %v244, %v885
    %v887 = vpop.f32.mrb[0].mxu0
    %v888 = vadd.f32 %v248, %v887
    %889 = vdwg.mxu0
    %v890 = vxor.u32 %v882, 2147483648
    %v891 = vxor.u32 %v884, 2147483648
    %v892 = vxor.u32 %v886, 2147483648
    %v893 = vxor.u32 %v888, 2147483648
    %v894 = vmul.f32 %v890, 1.442695
    %v895 = vpow.pop %v894
    %v896 = vmul.f32 %v891, 1.442695
    %v897 = vpow.pop %v896
    %v898 = vmul.f32 %v892, 1.442695
    %v899 = vpow.pop %v898
    %v900 = vmul.f32 %v893, 1.442695
    %v901 = vpow.pop %v900
    %v902 = vadd.f32 %v895, 1.0
    %v903 = vadd.f32 %v897, 1.0
    %v904 = vadd.f32 %v899, 1.0
    %v905 = vadd.f32 %v901, 1.0
    %v906 = vrcp.pop %v902
    %v907 = vmul.f32 1.0, %v906
    %v908 = vrcp.pop %v903
    %v909 = vmul.f32 1.0, %v908
    %v910 = vrcp.pop %v904
    %v911 = vmul.f32 1.0, %v910
    %v912 = vrcp.pop %v905
    %v913 = vmul.f32 1.0, %v912
    %vm914 = vcmp.lt.f32.partialorder %v838, %v907
    %vm915 = vcmp.lt.f32.partialorder %v839, %v909
    %vm916 = vcmp.lt.f32.partialorder %v840, %v911
    %vm917 = vcmp.lt.f32.partialorder %v841, %v913
    %v918 = vsel %vm914, 1, 0
    %v919 = vsel %vm915, 1, 0
    %v920 = vsel %vm916, 1, 0
    %v921 = vsel %vm917, 1, 0
    %v922 = vcvt.s32.f32 %v918
    %v923 = vcvt.s32.f32 %v919
    %v924 = vcvt.s32.f32 %v920
    %v925 = vcvt.s32.f32 %v921
    %v926 = vpack.c.bf16 %v924, %v922
    %v927 = vpack.c.bf16 %v925, %v923
    %s928 = scalar_lea.vmem [#allocation7], 80
    %v929 = vld [vmem:[%s928] sm:$0xff]
    %v930 = vld [vmem:[%s928 + $0x8] sm:$0xff]
    %931 = vmatprep.subr.bf16.mxu0 %v117
    %932 = vmatpush1.bf16.xpose.msra.mxu0 %v116
    %933 = vmatprep.subr.bf16.mxu0 %v119
    %934 = vmatpush1.bf16.xpose.msra.mxu0 %v118
    %935 = vmatprep.subr.bf16.mxu0 %v121
    %936 = vmatpush1.bf16.xpose.msra.mxu0 %v120
    %937 = vmatprep.subr.bf16.mxu0 %v123
    %938 = vmatpush1.bf16.xpose.msra.mxu0 %v122
    %939 = vmatprep.subr.bf16.mxu0 %v125
    %940 = vmatpush1.bf16.xpose.msra.mxu0 %v124
    %941 = vmatprep.subr.bf16.mxu0 %v127
    %942 = vmatpush1.bf16.xpose.msra.mxu0 %v126
    %943 = vmatprep.subr.bf16.mxu0 %v129
    %944 = vmatpush1.bf16.xpose.msra.mxu0 %v128
    %945 = vmatprep.subr.bf16.mxu0 %v131
    %946 = vmatpush1.bf16.xpose.msra.mxu0 %v130
    %947 = vmatprep.subr.bf16.mxu0 0
    %948 = vmatpush1.bf16.xpose.msra.mxu0 0
    %949 = vmatprep.subr.bf16.mxu0 0
    %950 = vmatpush1.bf16.xpose.msra.mxu0 0
    %951 = vmatprep.subr.bf16.mxu0 0
    %952 = vmatpush1.bf16.xpose.msra.mxu0 0
    %953 = vmatprep.subr.bf16.mxu0 0
    %954 = vmatpush1.bf16.xpose.msra.mxu0 0
    %955 = vmatprep.subr.bf16.mxu0 0
    %956 = vmatpush1.bf16.xpose.msra.mxu0 0
    %957 = vmatprep.subr.bf16.mxu0 0
    %958 = vmatpush1.bf16.xpose.msra.mxu0 0
    %959 = vmatprep.subr.bf16.mxu0 0
    %960 = vmatpush1.bf16.xpose.msra.mxu0 0
    %961 = vmatprep.subr.bf16.mxu0 0
    %962 = vmatpush1.bf16.xpose.msra.mxu0 0
    %963 = vmatprep.mubr.bf16.mxu0 %v927
    %964 = vmatmul.mubr.bf16.gmra.mrb[0].mxu0 %v926
    %v965 = vpop.f32.mrb[0].mxu0
    %v966 = vadd.f32 %v140, %v965
    %v967 = vpop.f32.mrb[0].mxu0
    %v968 = vpop.f32.mrb[0].mxu0
    %v969 = vadd.f32 %v140, %v968
    %v970 = vpop.f32.mrb[0].mxu0
    %971 = vdwg.mxu0
    %v972 = vxor.u32 %v966, 2147483648
    %v973 = vxor.u32 %v969, 2147483648
    %v974 = vmul.f32 %v972, 1.442695
    %v975 = vpow.pop %v974
    %v976 = vmul.f32 %v973, 1.442695
    %v977 = vpow.pop %v976
    %v978 = vadd.f32 %v975, 1.0
    %v979 = vadd.f32 %v977, 1.0
    %v980 = vrcp.pop %v978
    %v981 = vmul.f32 1.0, %v980
    %v982 = vrcp.pop %v979
    %v983 = vmul.f32 1.0, %v982
    %vm984 = vcmp.lt.f32.partialorder %v929, %v981
    %vm985 = vcmp.lt.f32.partialorder %v930, %v983
    %s986 = scalar_lea.vmem [#allocation8], 160
    %v987 = vld [vmem:[%s986] sm:$0xff]
    %v988 = vld [vmem:[%s986 + $0x8] sm:$0xff]
    %v989 = vld [vmem:[%s986 + $0x10] sm:$0xff]
    %v990 = vld [vmem:[%s986 + $0x18] sm:$0xff]
    %v991 = vsel %vm984, 1, 0
    %v992 = vsel %vm985, 1, 0
    %v993 = vcvt.s32.f32 %v991
    %v994 = vcvt.s32.f32 %v992
    %v995 = vpack.c.bf16 %v994, %v993
    %996 = vmatprep.subr.bf16.mxu0 %v117
    %997 = vmatpush1.bf16.msra.mxu0 %v116
    %998 = vmatprep.subr.bf16.mxu0 %v119
    %999 = vmatpush1.bf16.msra.mxu0 %v118
    %1000 = vmatprep.subr.bf16.mxu0 %v121
    %1001 = vmatpush1.bf16.msra.mxu0 %v120
    %1002 = vmatprep.subr.bf16.mxu0 %v123
    %1003 = vmatpush1.bf16.msra.mxu0 %v122
    %1004 = vmatprep.subr.bf16.mxu0 %v125
    %1005 = vmatpush1.bf16.msra.mxu0 %v124
    %1006 = vmatprep.subr.bf16.mxu0 %v127
    %1007 = vmatpush1.bf16.msra.mxu0 %v126
    %1008 = vmatprep.subr.bf16.mxu0 %v129
    %1009 = vmatpush1.bf16.msra.mxu0 %v128
    %1010 = vmatprep.subr.bf16.mxu0 %v131
    %1011 = vmatpush1.bf16.msra.mxu0 %v130
    %1012 = vmatprep.subr.bf16.mxu0 0
    %1013 = vmatpush1.bf16.msra.mxu0 0
    %1014 = vmatprep.subr.bf16.mxu0 0
    %1015 = vmatpush1.bf16.msra.mxu0 0
    %1016 = vmatprep.subr.bf16.mxu0 0
    %1017 = vmatpush1.bf16.msra.mxu0 0
    %1018 = vmatprep.subr.bf16.mxu0 0
    %1019 = vmatpush1.bf16.msra.mxu0 0
    %1020 = vmatprep.subr.bf16.mxu0 0
    %1021 = vmatpush1.bf16.msra.mxu0 0
    %1022 = vmatprep.subr.bf16.mxu0 0
    %1023 = vmatpush1.bf16.msra.mxu0 0
    %1024 = vmatprep.subr.bf16.mxu0 0
    %1025 = vmatpush1.bf16.msra.mxu0 0
    %1026 = vmatprep.subr.bf16.mxu0 0
    %1027 = vmatpush1.bf16.msra.mxu0 0
    %1028 = vmatprep.mubr.bf16.mxu0 0
    %1029 = vmatmul.mubr.bf16.gmra.mrb[0].mxu0 %v995
    %v1030 = vpop.f32.mrb[0].mxu0
    %v1031 = vadd.f32 %v244, %v1030
    %v1032 = vpop.f32.mrb[0].mxu0
    %v1033 = vadd.f32 %v248, %v1032
    %v1034 = vpop.f32.mrb[0].mxu0
    %v1035 = vadd.f32 %v244, %v1034
    %v1036 = vpop.f32.mrb[0].mxu0
    %v1037 = vadd.f32 %v248, %v1036
    %1038 = vdwg.mxu0
    %v1039 = vxor.u32 %v1031, 2147483648
    %v1040 = vxor.u32 %v1033, 2147483648
    %v1041 = vxor.u32 %v1035, 2147483648
    %v1042 = vxor.u32 %v1037, 2147483648
    %v1043 = vmul.f32 %v1039, 1.442695
    %v1044 = vpow.pop %v1043
    %v1045 = vmul.f32 %v1040, 1.442695
    %v1046 = vpow.pop %v1045
    %v1047 = vmul.f32 %v1041, 1.442695
    %v1048 = vpow.pop %v1047
    %v1049 = vmul.f32 %v1042, 1.442695
    %v1050 = vpow.pop %v1049
    %v1051 = vadd.f32 %v1044, 1.0
    %v1052 = vadd.f32 %v1046, 1.0
    %v1053 = vadd.f32 %v1048, 1.0
    %v1054 = vadd.f32 %v1050, 1.0
    %v1055 = vrcp.pop %v1051
    %v1056 = vmul.f32 1.0, %v1055
    %v1057 = vrcp.pop %v1052
    %v1058 = vmul.f32 1.0, %v1057
    %v1059 = vrcp.pop %v1053
    %v1060 = vmul.f32 1.0, %v1059
    %v1061 = vrcp.pop %v1054
    %v1062 = vmul.f32 1.0, %v1061
    %vm1063 = vcmp.lt.f32.partialorder %v987, %v1056
    %vm1064 = vcmp.lt.f32.partialorder %v988, %v1058
    %vm1065 = vcmp.lt.f32.partialorder %v989, %v1060
    %vm1066 = vcmp.lt.f32.partialorder %v990, %v1062
    %v1067 = vsel %vm1063, 1, 0
    %v1068 = vsel %vm1064, 1, 0
    %v1069 = vsel %vm1065, 1, 0
    %v1070 = vsel %vm1066, 1, 0
    %v1071 = vcvt.s32.f32 %v1067
    %v1072 = vcvt.s32.f32 %v1068
    %v1073 = vcvt.s32.f32 %v1069
    %v1074 = vcvt.s32.f32 %v1070
    %v1075 = vpack.c.bf16 %v1073, %v1071
    %v1076 = vpack.c.bf16 %v1074, %v1072
    %s1077 = scalar_lea.vmem [#allocation7], 96
    %v1078 = vld [vmem:[%s1077] sm:$0xff]
    %v1079 = vld [vmem:[%s1077 + $0x8] sm:$0xff]
    %1080 = vmatprep.subr.bf16.mxu0 %v117
    %1081 = vmatpush1.bf16.xpose.msra.mxu0 %v116
    %1082 = vmatprep.subr.bf16.mxu0 %v119
    %1083 = vmatpush1.bf16.xpose.msra.mxu0 %v118
    %1084 = vmatprep.subr.bf16.mxu0 %v121
    %1085 = vmatpush1.bf16.xpose.msra.mxu0 %v120
    %1086 = vmatprep.subr.bf16.mxu0 %v123
    %1087 = vmatpush1.bf16.xpose.msra.mxu0 %v122
    %1088 = vmatprep.subr.bf16.mxu0 %v125
    %1089 = vmatpush1.bf16.xpose.msra.mxu0 %v124
    %1090 = vmatprep.subr.bf16.mxu0 %v127
    %1091 = vmatpush1.bf16.xpose.msra.mxu0 %v126
    %1092 = vmatprep.subr.bf16.mxu0 %v129
    %1093 = vmatpush1.bf16.xpose.msra.mxu0 %v128
    %1094 = vmatprep.subr.bf16.mxu0 %v131
    %1095 = vmatpush1.bf16.xpose.msra.mxu0 %v130
    %1096 = vmatprep.subr.bf16.mxu0 0
    %1097 = vmatpush1.bf16.xpose.msra.mxu0 0
    %1098 = vmatprep.subr.bf16.mxu0 0
    %1099 = vmatpush1.bf16.xpose.msra.mxu0 0
    %1100 = vmatprep.subr.bf16.mxu0 0
    %1101 = vmatpush1.bf16.xpose.msra.mxu0 0
    %1102 = vmatprep.subr.bf16.mxu0 0
    %1103 = vmatpush1.bf16.xpose.msra.mxu0 0
    %1104 = vmatprep.subr.bf16.mxu0 0
    %1105 = vmatpush1.bf16.xpose.msra.mxu0 0
    %1106 = vmatprep.subr.bf16.mxu0 0
    %1107 = vmatpush1.bf16.xpose.msra.mxu0 0
    %1108 = vmatprep.subr.bf16.mxu0 0
    %1109 = vmatpush1.bf16.xpose.msra.mxu0 0
    %1110 = vmatprep.subr.bf16.mxu0 0
    %1111 = vmatpush1.bf16.xpose.msra.mxu0 0
    %1112 = vmatprep.mubr.bf16.mxu0 %v1076
    %1113 = vmatmul.mubr.bf16.gmra.mrb[0].mxu0 %v1075
    %v1114 = vpop.f32.mrb[0].mxu0
    %v1115 = vadd.f32 %v140, %v1114
    %v1116 = vpop.f32.mrb[0].mxu0
    %v1117 = vpop.f32.mrb[0].mxu0
    %v1118 = vadd.f32 %v140, %v1117
    %v1119 = vpop.f32.mrb[0].mxu0
    %1120 = vdwg.mxu0
    %v1121 = vxor.u32 %v1115, 2147483648
    %v1122 = vxor.u32 %v1118, 2147483648
    %v1123 = vmul.f32 %v1121, 1.442695
    %v1124 = vpow.pop %v1123
    %v1125 = vmul.f32 %v1122, 1.442695
    %v1126 = vpow.pop %v1125
    %v1127 = vadd.f32 %v1124, 1.0
    %v1128 = vadd.f32 %v1126, 1.0
    %v1129 = vrcp.pop %v1127
    %v1130 = vmul.f32 1.0, %v1129
    %v1131 = vrcp.pop %v1128
    %v1132 = vmul.f32 1.0, %v1131
    %vm1133 = vcmp.lt.f32.partialorder %v1078, %v1130
    %vm1134 = vcmp.lt.f32.partialorder %v1079, %v1132
    %s1135 = scalar_lea.vmem [#allocation8], 192
    %v1136 = vld [vmem:[%s1135] sm:$0xff]
    %v1137 = vld [vmem:[%s1135 + $0x8] sm:$0xff]
    %v1138 = vld [vmem:[%s1135 + $0x10] sm:$0xff]
    %v1139 = vld [vmem:[%s1135 + $0x18] sm:$0xff]
    %v1140 = vsel %vm1133, 1, 0
    %v1141 = vsel %vm1134, 1, 0
    %v1142 = vcvt.s32.f32 %v1140
    %v1143 = vcvt.s32.f32 %v1141
    %v1144 = vpack.c.bf16 %v1143, %v1142
    %1145 = vmatprep.subr.bf16.mxu0 %v117
    %1146 = vmatpush1.bf16.msra.mxu0 %v116
    %1147 = vmatprep.subr.bf16.mxu0 %v119
    %1148 = vmatpush1.bf16.msra.mxu0 %v118
    %1149 = vmatprep.subr.bf16.mxu0 %v121
    %1150 = vmatpush1.bf16.msra.mxu0 %v120
    %1151 = vmatprep.subr.bf16.mxu0 %v123
    %1152 = vmatpush1.bf16.msra.mxu0 %v122
    %1153 = vmatprep.subr.bf16.mxu0 %v125
    %1154 = vmatpush1.bf16.msra.mxu0 %v124
    %1155 = vmatprep.subr.bf16.mxu0 %v127
    %1156 = vmatpush1.bf16.msra.mxu0 %v126
    %1157 = vmatprep.subr.bf16.mxu0 %v129
    %1158 = vmatpush1.bf16.msra.mxu0 %v128
    %1159 = vmatprep.subr.bf16.mxu0 %v131
    %1160 = vmatpush1.bf16.msra.mxu0 %v130
    %1161 = vmatprep.subr.bf16.mxu0 0
    %1162 = vmatpush1.bf16.msra.mxu0 0
    %1163 = vmatprep.subr.bf16.mxu0 0
    %1164 = vmatpush1.bf16.msra.mxu0 0
    %1165 = vmatprep.subr.bf16.mxu0 0
    %1166 = vmatpush1.bf16.msra.mxu0 0
    %1167 = vmatprep.subr.bf16.mxu0 0
    %1168 = vmatpush1.bf16.msra.mxu0 0
    %1169 = vmatprep.subr.bf16.mxu0 0
    %1170 = vmatpush1.bf16.msra.mxu0 0
    %1171 = vmatprep.subr.bf16.mxu0 0
    %1172 = vmatpush1.bf16.msra.mxu0 0
    %1173 = vmatprep.subr.bf16.mxu0 0
    %1174 = vmatpush1.bf16.msra.mxu0 0
    %1175 = vmatprep.subr.bf16.mxu0 0
    %1176 = vmatpush1.bf16.msra.mxu0 0
    %1177 = vmatprep.mubr.bf16.mxu0 0
    %1178 = vmatmul.mubr.bf16.gmra.mrb[0].mxu0 %v1144
    %v1179 = vpop.f32.mrb[0].mxu0
    %v1180 = vadd.f32 %v244, %v1179
    %v1181 = vpop.f32.mrb[0].mxu0
    %v1182 = vadd.f32 %v248, %v1181
    %v1183 = vpop.f32.mrb[0].mxu0
    %v1184 = vadd.f32 %v244, %v1183
    %v1185 = vpop.f32.mrb[0].mxu0
    %v1186 = vadd.f32 %v248, %v1185
    %1187 = vdwg.mxu0
    %v1188 = vxor.u32 %v1180, 2147483648
    %v1189 = vxor.u32 %v1182, 2147483648
    %v1190 = vxor.u32 %v1184, 2147483648
    %v1191 = vxor.u32 %v1186, 2147483648
    %v1192 = vmul.f32 %v1188, 1.442695
    %v1193 = vpow.pop %v1192
    %v1194 = vmul.f32 %v1189, 1.442695
    %v1195 = vpow.pop %v1194
    %v1196 = vmul.f32 %v1190, 1.442695
    %v1197 = vpow.pop %v1196
    %v1198 = vmul.f32 %v1191, 1.442695
    %v1199 = vpow.pop %v1198
    %v1200 = vadd.f32 %v1193, 1.0
    %v1201 = vadd.f32 %v1195, 1.0
    %v1202 = vadd.f32 %v1197, 1.0
    %v1203 = vadd.f32 %v1199, 1.0
    %v1204 = vrcp.pop %v1200
    %v1205 = vmul.f32 1.0, %v1204
    %v1206 = vrcp.pop %v1201
    %v1207 = vmul.f32 1.0, %v1206
    %v1208 = vrcp.pop %v1202
    %v1209 = vmul.f32 1.0, %v1208
    %v1210 = vrcp.pop %v1203
    %v1211 = vmul.f32 1.0, %v1210
    %vm1212 = vcmp.lt.f32.partialorder %v1136, %v1205
    %vm1213 = vcmp.lt.f32.partialorder %v1137, %v1207
    %vm1214 = vcmp.lt.f32.partialorder %v1138, %v1209
    %vm1215 = vcmp.lt.f32.partialorder %v1139, %v1211
    %v1216 = vsel %vm1212, 1, 0
    %v1217 = vsel %vm1213, 1, 0
    %v1218 = vsel %vm1214, 1, 0
    %v1219 = vsel %vm1215, 1, 0
    %v1220 = vcvt.s32.f32 %v1216
    %v1221 = vcvt.s32.f32 %v1217
    %v1222 = vcvt.s32.f32 %v1218
    %v1223 = vcvt.s32.f32 %v1219
    %v1224 = vpack.c.bf16 %v1222, %v1220
    %v1225 = vpack.c.bf16 %v1223, %v1221
    %s1226 = scalar_lea.vmem [#allocation7], 112
    %v1227 = vld [vmem:[%s1226] sm:$0xff]
    %v1228 = vld [vmem:[%s1226 + $0x8] sm:$0xff]
    %1229 = vmatprep.subr.bf16.mxu0 %v117
    %1230 = vmatpush1.bf16.xpose.msra.mxu0 %v116
    %1231 = vmatprep.subr.bf16.mxu0 %v119
    %1232 = vmatpush1.bf16.xpose.msra.mxu0 %v118
    %1233 = vmatprep.subr.bf16.mxu0 %v121
    %1234 = vmatpush1.bf16.xpose.msra.mxu0 %v120
    %1235 = vmatprep.subr.bf16.mxu0 %v123
    %1236 = vmatpush1.bf16.xpose.msra.mxu0 %v122
    %1237 = vmatprep.subr.bf16.mxu0 %v125
    %1238 = vmatpush1.bf16.xpose.msra.mxu0 %v124
    %1239 = vmatprep.subr.bf16.mxu0 %v127
    %1240 = vmatpush1.bf16.xpose.msra.mxu0 %v126
    %1241 = vmatprep.subr.bf16.mxu0 %v129
    %1242 = vmatpush1.bf16.xpose.msra.mxu0 %v128
    %1243 = vmatprep.subr.bf16.mxu0 %v131
    %1244 = vmatpush1.bf16.xpose.msra.mxu0 %v130
    %1245 = vmatprep.subr.bf16.mxu0 0
    %1246 = vmatpush1.bf16.xpose.msra.mxu0 0
    %1247 = vmatprep.subr.bf16.mxu0 0
    %1248 = vmatpush1.bf16.xpose.msra.mxu0 0
    %1249 = vmatprep.subr.bf16.mxu0 0
    %1250 = vmatpush1.bf16.xpose.msra.mxu0 0
    %1251 = vmatprep.subr.bf16.mxu0 0
    %1252 = vmatpush1.bf16.xpose.msra.mxu0 0
    %1253 = vmatprep.subr.bf16.mxu0 0
    %1254 = vmatpush1.bf16.xpose.msra.mxu0 0
    %1255 = vmatprep.subr.bf16.mxu0 0
    %1256 = vmatpush1.bf16.xpose.msra.mxu0 0
    %1257 = vmatprep.subr.bf16.mxu0 0
    %1258 = vmatpush1.bf16.xpose.msra.mxu0 0
    %1259 = vmatprep.subr.bf16.mxu0 0
    %1260 = vmatpush1.bf16.xpose.msra.mxu0 0
    %1261 = vmatprep.mubr.bf16.mxu0 %v1225
    %1262 = vmatmul.mubr.bf16.gmra.mrb[0].mxu0 %v1224
    %v1263 = vpop.f32.mrb[0].mxu0
    %v1264 = vadd.f32 %v140, %v1263
    %v1265 = vpop.f32.mrb[0].mxu0
    %v1266 = vpop.f32.mrb[0].mxu0
    %v1267 = vadd.f32 %v140, %v1266
    %v1268 = vpop.f32.mrb[0].mxu0
    %1269 = vdwg.mxu0
    %v1270 = vxor.u32 %v1264, 2147483648
    %v1271 = vxor.u32 %v1267, 2147483648
    %v1272 = vmul.f32 %v1270, 1.442695
    %v1273 = vpow.pop %v1272
    %v1274 = vmul.f32 %v1271, 1.442695
    %v1275 = vpow.pop %v1274
    %v1276 = vadd.f32 %v1273, 1.0
    %v1277 = vadd.f32 %v1275, 1.0
    %v1278 = vrcp.pop %v1276
    %v1279 = vmul.f32 1.0, %v1278
    %v1280 = vrcp.pop %v1277
    %v1281 = vmul.f32 1.0, %v1280
    %vm1282 = vcmp.lt.f32.partialorder %v1227, %v1279
    %vm1283 = vcmp.lt.f32.partialorder %v1228, %v1281
    %s1284 = scalar_lea.vmem [#allocation8], 224
    %v1285 = vld [vmem:[%s1284] sm:$0xff]
    %v1286 = vld [vmem:[%s1284 + $0x8] sm:$0xff]
    %v1287 = vld [vmem:[%s1284 + $0x10] sm:$0xff]
    %v1288 = vld [vmem:[%s1284 + $0x18] sm:$0xff]
    %v1289 = vsel %vm1282, 1, 0
    %v1290 = vsel %vm1283, 1, 0
    %v1291 = vcvt.s32.f32 %v1289
    %v1292 = vcvt.s32.f32 %v1290
    %v1293 = vpack.c.bf16 %v1292, %v1291
    %1294 = vmatprep.subr.bf16.mxu0 %v117
    %1295 = vmatpush1.bf16.msra.mxu0 %v116
    %1296 = vmatprep.subr.bf16.mxu0 %v119
    %1297 = vmatpush1.bf16.msra.mxu0 %v118
    %1298 = vmatprep.subr.bf16.mxu0 %v121
    %1299 = vmatpush1.bf16.msra.mxu0 %v120
    %1300 = vmatprep.subr.bf16.mxu0 %v123
    %1301 = vmatpush1.bf16.msra.mxu0 %v122
    %1302 = vmatprep.subr.bf16.mxu0 %v125
    %1303 = vmatpush1.bf16.msra.mxu0 %v124
    %1304 = vmatprep.subr.bf16.mxu0 %v127
    %1305 = vmatpush1.bf16.msra.mxu0 %v126
    %1306 = vmatprep.subr.bf16.mxu0 %v129
    %1307 = vmatpush1.bf16.msra.mxu0 %v128
    %1308 = vmatprep.subr.bf16.mxu0 %v131
    %1309 = vmatpush1.bf16.msra.mxu0 %v130
    %1310 = vmatprep.subr.bf16.mxu0 0
    %1311 = vmatpush1.bf16.msra.mxu0 0
    %1312 = vmatprep.subr.bf16.mxu0 0
    %1313 = vmatpush1.bf16.msra.mxu0 0
    %1314 = vmatprep.subr.bf16.mxu0 0
    %1315 = vmatpush1.bf16.msra.mxu0 0
    %1316 = vmatprep.subr.bf16.mxu0 0
    %1317 = vmatpush1.bf16.msra.mxu0 0
    %1318 = vmatprep.subr.bf16.mxu0 0
    %1319 = vmatpush1.bf16.msra.mxu0 0
    %1320 = vmatprep.subr.bf16.mxu0 0
    %1321 = vmatpush1.bf16.msra.mxu0 0
    %1322 = vmatprep.subr.bf16.mxu0 0
    %1323 = vmatpush1.bf16.msra.mxu0 0
    %1324 = vmatprep.subr.bf16.mxu0 0
    %1325 = vmatpush1.bf16.msra.mxu0 0
    %1326 = vmatprep.mubr.bf16.mxu0 0
    %1327 = vmatmul.mubr.bf16.gmra.mrb[0].mxu0 %v1293
    %v1328 = vpop.f32.mrb[0].mxu0
    %v1329 = vadd.f32 %v244, %v1328
    %v1330 = vpop.f32.mrb[0].mxu0
    %v1331 = vadd.f32 %v248, %v1330
    %v1332 = vpop.f32.mrb[0].mxu0
    %v1333 = vadd.f32 %v244, %v1332
    %v1334 = vpop.f32.mrb[0].mxu0
    %v1335 = vadd.f32 %v248, %v1334
    %1336 = vdwg.mxu0
    %v1337 = vxor.u32 %v1329, 2147483648
    %v1338 = vxor.u32 %v1331, 2147483648
    %v1339 = vxor.u32 %v1333, 2147483648
    %v1340 = vxor.u32 %v1335, 2147483648
    %v1341 = vmul.f32 %v1337, 1.442695
    %v1342 = vpow.pop %v1341
    %v1343 = vmul.f32 %v1338, 1.442695
    %v1344 = vpow.pop %v1343
    %v1345 = vmul.f32 %v1339, 1.442695
    %v1346 = vpow.pop %v1345
    %v1347 = vmul.f32 %v1340, 1.442695
    %v1348 = vpow.pop %v1347
    %v1349 = vadd.f32 %v1342, 1.0
    %v1350 = vadd.f32 %v1344, 1.0
    %v1351 = vadd.f32 %v1346, 1.0
    %v1352 = vadd.f32 %v1348, 1.0
    %v1353 = vrcp.pop %v1349
    %v1354 = vmul.f32 1.0, %v1353
    %v1355 = vrcp.pop %v1350
    %v1356 = vmul.f32 1.0, %v1355
    %v1357 = vrcp.pop %v1351
    %v1358 = vmul.f32 1.0, %v1357
    %v1359 = vrcp.pop %v1352
    %v1360 = vmul.f32 1.0, %v1359
    %vm1361 = vcmp.lt.f32.partialorder %v1285, %v1354
    %vm1362 = vcmp.lt.f32.partialorder %v1286, %v1356
    %vm1363 = vcmp.lt.f32.partialorder %v1287, %v1358
    %vm1364 = vcmp.lt.f32.partialorder %v1288, %v1360
    %v1365 = vsel %vm1361, 1, 0
    %v1366 = vsel %vm1362, 1, 0
    %v1367 = vsel %vm1363, 1, 0
    %v1368 = vsel %vm1364, 1, 0
    %v1369 = vcvt.s32.f32 %v1365
    %v1370 = vcvt.s32.f32 %v1366
    %v1371 = vcvt.s32.f32 %v1367
    %v1372 = vcvt.s32.f32 %v1368
    %v1373 = vpack.c.bf16 %v1371, %v1369
    %v1374 = vpack.c.bf16 %v1372, %v1370
    %s1375 = scalar_lea.vmem [#allocation7], 128
    %v1376 = vld [vmem:[%s1375] sm:$0xff]
    %v1377 = vld [vmem:[%s1375 + $0x8] sm:$0xff]
    %1378 = vmatprep.subr.bf16.mxu0 %v117
    %1379 = vmatpush1.bf16.xpose.msra.mxu0 %v116
    %1380 = vmatprep.subr.bf16.mxu0 %v119
    %1381 = vmatpush1.bf16.xpose.msra.mxu0 %v118
    %1382 = vmatprep.subr.bf16.mxu0 %v121
    %1383 = vmatpush1.bf16.xpose.msra.mxu0 %v120
    %1384 = vmatprep.subr.bf16.mxu0 %v123
    %1385 = vmatpush1.bf16.xpose.msra.mxu0 %v122
    %1386 = vmatprep.subr.bf16.mxu0 %v125
    %1387 = vmatpush1.bf16.xpose.msra.mxu0 %v124
    %1388 = vmatprep.subr.bf16.mxu0 %v127
    %1389 = vmatpush1.bf16.xpose.msra.mxu0 %v126
    %1390 = vmatprep.subr.bf16.mxu0 %v129
    %1391 = vmatpush1.bf16.xpose.msra.mxu0 %v128
    %1392 = vmatprep.subr.bf16.mxu0 %v131
    %1393 = vmatpush1.bf16.xpose.msra.mxu0 %v130
    %1394 = vmatprep.subr.bf16.mxu0 0
    %1395 = vmatpush1.bf16.xpose.msra.mxu0 0
    %1396 = vmatprep.subr.bf16.mxu0 0
    %1397 = vmatpush1.bf16.xpose.msra.mxu0 0
    %1398 = vmatprep.subr.bf16.mxu0 0
    %1399 = vmatpush1.bf16.xpose.msra.mxu0 0
    %1400 = vmatprep.subr.bf16.mxu0 0
    %1401 = vmatpush1.bf16.xpose.msra.mxu0 0
    %1402 = vmatprep.subr.bf16.mxu0 0
    %1403 = vmatpush1.bf16.xpose.msra.mxu0 0
    %1404 = vmatprep.subr.bf16.mxu0 0
    %1405 = vmatpush1.bf16.xpose.msra.mxu0 0
    %1406 = vmatprep.subr.bf16.mxu0 0
    %1407 = vmatpush1.bf16.xpose.msra.mxu0 0
    %1408 = vmatprep.subr.bf16.mxu0 0
    %1409 = vmatpush1.bf16.xpose.msra.mxu0 0
    %1410 = vmatprep.mubr.bf16.mxu0 %v1374
    %1411 = vmatmul.mubr.bf16.gmra.mrb[0].mxu0 %v1373
    %v1412 = vpop.f32.mrb[0].mxu0
    %v1413 = vadd.f32 %v140, %v1412
    %v1414 = vpop.f32.mrb[0].mxu0
    %v1415 = vpop.f32.mrb[0].mxu0
    %v1416 = vadd.f32 %v140, %v1415
    %v1417 = vpop.f32.mrb[0].mxu0
    %1418 = vdwg.mxu0
    %v1419 = vxor.u32 %v1413, 2147483648
    %v1420 = vxor.u32 %v1416, 2147483648
    %v1421 = vmul.f32 %v1419, 1.442695
    %v1422 = vpow.pop %v1421
    %v1423 = vmul.f32 %v1420, 1.442695
    %v1424 = vpow.pop %v1423
    %v1425 = vadd.f32 %v1422, 1.0
    %v1426 = vadd.f32 %v1424, 1.0
    %v1427 = vrcp.pop %v1425
    %v1428 = vmul.f32 1.0, %v1427
    %v1429 = vrcp.pop %v1426
    %v1430 = vmul.f32 1.0, %v1429
    %vm1431 = vcmp.lt.f32.partialorder %v1376, %v1428
    %vm1432 = vcmp.lt.f32.partialorder %v1377, %v1430
    %s1433 = scalar_lea.vmem [#allocation8], 256
    %v1434 = vld [vmem:[%s1433] sm:$0xff]
    %v1435 = vld [vmem:[%s1433 + $0x8] sm:$0xff]
    %v1436 = vld [vmem:[%s1433 + $0x10] sm:$0xff]
    %v1437 = vld [vmem:[%s1433 + $0x18] sm:$0xff]
    %v1438 = vsel %vm1431, 1, 0
    %v1439 = vsel %vm1432, 1, 0
    %v1440 = vcvt.s32.f32 %v1438
    %v1441 = vcvt.s32.f32 %v1439
    %v1442 = vpack.c.bf16 %v1441, %v1440
    %1443 = vmatprep.subr.bf16.mxu0 %v117
    %1444 = vmatpush1.bf16.msra.mxu0 %v116
    %1445 = vmatprep.subr.bf16.mxu0 %v119
    %1446 = vmatpush1.bf16.msra.mxu0 %v118
    %1447 = vmatprep.subr.bf16.mxu0 %v121
    %1448 = vmatpush1.bf16.msra.mxu0 %v120
    %1449 = vmatprep.subr.bf16.mxu0 %v123
    %1450 = vmatpush1.bf16.msra.mxu0 %v122
    %1451 = vmatprep.subr.bf16.mxu0 %v125
    %1452 = vmatpush1.bf16.msra.mxu0 %v124
    %1453 = vmatprep.subr.bf16.mxu0 %v127
    %1454 = vmatpush1.bf16.msra.mxu0 %v126
    %1455 = vmatprep.subr.bf16.mxu0 %v129
    %1456 = vmatpush1.bf16.msra.mxu0 %v128
    %1457 = vmatprep.subr.bf16.mxu0 %v131
    %1458 = vmatpush1.bf16.msra.mxu0 %v130
    %1459 = vmatprep.subr.bf16.mxu0 0
    %1460 = vmatpush1.bf16.msra.mxu0 0
    %1461 = vmatprep.subr.bf16.mxu0 0
    %1462 = vmatpush1.bf16.msra.mxu0 0
    %1463 = vmatprep.subr.bf16.mxu0 0
    %1464 = vmatpush1.bf16.msra.mxu0 0
    %1465 = vmatprep.subr.bf16.mxu0 0
    %1466 = vmatpush1.bf16.msra.mxu0 0
    %1467 = vmatprep.subr.bf16.mxu0 0
    %1468 = vmatpush1.bf16.msra.mxu0 0
    %1469 = vmatprep.subr.bf16.mxu0 0
    %1470 = vmatpush1.bf16.msra.mxu0 0
    %1471 = vmatprep.subr.bf16.mxu0 0
    %1472 = vmatpush1.bf16.msra.mxu0 0
    %1473 = vmatprep.subr.bf16.mxu0 0
    %1474 = vmatpush1.bf16.msra.mxu0 0
    %1475 = vmatprep.mubr.bf16.mxu0 0
    %1476 = vmatmul.mubr.bf16.gmra.mrb[0].mxu0 %v1442
    %v1477 = vpop.f32.mrb[0].mxu0
    %v1478 = vadd.f32 %v244, %v1477
    %v1479 = vpop.f32.mrb[0].mxu0
    %v1480 = vadd.f32 %v248, %v1479
    %v1481 = vpop.f32.mrb[0].mxu0
    %v1482 = vadd.f32 %v244, %v1481
    %v1483 = vpop.f32.mrb[0].mxu0
    %v1484 = vadd.f32 %v248, %v1483
    %1485 = vdwg.mxu0
    %v1486 = vxor.u32 %v1478, 2147483648
    %v1487 = vxor.u32 %v1480, 2147483648
    %v1488 = vxor.u32 %v1482, 2147483648
    %v1489 = vxor.u32 %v1484, 2147483648
    %v1490 = vmul.f32 %v1486, 1.442695
    %v1491 = vpow.pop %v1490
    %v1492 = vmul.f32 %v1487, 1.442695
    %v1493 = vpow.pop %v1492
    %v1494 = vmul.f32 %v1488, 1.442695
    %v1495 = vpow.pop %v1494
    %v1496 = vmul.f32 %v1489, 1.442695
    %v1497 = vpow.pop %v1496
    %v1498 = vadd.f32 %v1491, 1.0
    %v1499 = vadd.f32 %v1493, 1.0
    %v1500 = vadd.f32 %v1495, 1.0
    %v1501 = vadd.f32 %v1497, 1.0
    %v1502 = vrcp.pop %v1498
    %v1503 = vmul.f32 1.0, %v1502
    %v1504 = vrcp.pop %v1499
    %v1505 = vmul.f32 1.0, %v1504
    %v1506 = vrcp.pop %v1500
    %v1507 = vmul.f32 1.0, %v1506
    %v1508 = vrcp.pop %v1501
    %v1509 = vmul.f32 1.0, %v1508
    %vm1510 = vcmp.lt.f32.partialorder %v1434, %v1503
    %vm1511 = vcmp.lt.f32.partialorder %v1435, %v1505
    %vm1512 = vcmp.lt.f32.partialorder %v1436, %v1507
    %vm1513 = vcmp.lt.f32.partialorder %v1437, %v1509
    %v1514 = vsel %vm1510, 1, 0
    %v1515 = vsel %vm1511, 1, 0
    %v1516 = vsel %vm1512, 1, 0
    %v1517 = vsel %vm1513, 1, 0
    %v1518 = vcvt.s32.f32 %v1514
    %v1519 = vcvt.s32.f32 %v1515
    %v1520 = vcvt.s32.f32 %v1516
    %v1521 = vcvt.s32.f32 %v1517
    %v1522 = vpack.c.bf16 %v1520, %v1518
    %v1523 = vpack.c.bf16 %v1521, %v1519
    %s1524 = scalar_lea.vmem [#allocation7], 144
    %v1525 = vld [vmem:[%s1524] sm:$0xff]
    %v1526 = vld [vmem:[%s1524 + $0x8] sm:$0xff]
    %1527 = vmatprep.subr.bf16.mxu0 %v117
    %1528 = vmatpush1.bf16.xpose.msra.mxu0 %v116
    %1529 = vmatprep.subr.bf16.mxu0 %v119
    %1530 = vmatpush1.bf16.xpose.msra.mxu0 %v118
    %1531 = vmatprep.subr.bf16.mxu0 %v121
    %1532 = vmatpush1.bf16.xpose.msra.mxu0 %v120
    %1533 = vmatprep.subr.bf16.mxu0 %v123
    %1534 = vmatpush1.bf16.xpose.msra.mxu0 %v122
    %1535 = vmatprep.subr.bf16.mxu0 %v125
    %1536 = vmatpush1.bf16.xpose.msra.mxu0 %v124
    %1537 = vmatprep.subr.bf16.mxu0 %v127
    %1538 = vmatpush1.bf16.xpose.msra.mxu0 %v126
    %1539 = vmatprep.subr.bf16.mxu0 %v129
    %1540 = vmatpush1.bf16.xpose.msra.mxu0 %v128
    %1541 = vmatprep.subr.bf16.mxu0 %v131
    %1542 = vmatpush1.bf16.xpose.msra.mxu0 %v130
    %1543 = vmatprep.subr.bf16.mxu0 0
    %1544 = vmatpush1.bf16.xpose.msra.mxu0 0
    %1545 = vmatprep.subr.bf16.mxu0 0
    %1546 = vmatpush1.bf16.xpose.msra.mxu0 0
    %1547 = vmatprep.subr.bf16.mxu0 0
    %1548 = vmatpush1.bf16.xpose.msra.mxu0 0
    %1549 = vmatprep.subr.bf16.mxu0 0
    %1550 = vmatpush1.bf16.xpose.msra.mxu0 0
    %1551 = vmatprep.subr.bf16.mxu0 0
    %1552 = vmatpush1.bf16.xpose.msra.mxu0 0
    %1553 = vmatprep.subr.bf16.mxu0 0
    %1554 = vmatpush1.bf16.xpose.msra.mxu0 0
    %1555 = vmatprep.subr.bf16.mxu0 0
    %1556 = vmatpush1.bf16.xpose.msra.mxu0 0
    %1557 = vmatprep.subr.bf16.mxu0 0
    %1558 = vmatpush1.bf16.xpose.msra.mxu0 0
    %1559 = vmatprep.mubr.bf16.mxu0 %v1523
    %1560 = vmatmul.mubr.bf16.gmra.mrb[0].mxu0 %v1522
    %v1561 = vpop.f32.mrb[0].mxu0
    %v1562 = vadd.f32 %v140, %v1561
    %v1563 = vpop.f32.mrb[0].mxu0
    %v1564 = vpop.f32.mrb[0].mxu0
    %v1565 = vadd.f32 %v140, %v1564
    %v1566 = vpop.f32.mrb[0].mxu0
    %1567 = vdwg.mxu0
    %v1568 = vxor.u32 %v1562, 2147483648
    %v1569 = vxor.u32 %v1565, 2147483648
    %v1570 = vmul.f32 %v1568, 1.442695
    %v1571 = vpow.pop %v1570
    %v1572 = vmul.f32 %v1569, 1.442695
    %v1573 = vpow.pop %v1572
    %v1574 = vadd.f32 %v1571, 1.0
    %v1575 = vadd.f32 %v1573, 1.0
    %v1576 = vrcp.pop %v1574
    %v1577 = vmul.f32 1.0, %v1576
    %v1578 = vrcp.pop %v1575
    %v1579 = vmul.f32 1.0, %v1578
    %vm1580 = vcmp.lt.f32.partialorder %v1525, %v1577
    %vm1581 = vcmp.lt.f32.partialorder %v1526, %v1579
    %s1582 = scalar_lea.vmem [#allocation8], 288
    %v1583 = vld [vmem:[%s1582] sm:$0xff]
    %v1584 = vld [vmem:[%s1582 + $0x8] sm:$0xff]
    %v1585 = vld [vmem:[%s1582 + $0x10] sm:$0xff]
    %v1586 = vld [vmem:[%s1582 + $0x18] sm:$0xff]
    %v1587 = vsel %vm1580, 1, 0
    %v1588 = vsel %vm1581, 1, 0
    %v1589 = vcvt.s32.f32 %v1587
    %v1590 = vcvt.s32.f32 %v1588
    %v1591 = vpack.c.bf16 %v1590, %v1589
    %1592 = vmatprep.subr.bf16.mxu0 %v117
    %1593 = vmatpush1.bf16.msra.mxu0 %v116
    %1594 = vmatprep.subr.bf16.mxu0 %v119
    %1595 = vmatpush1.bf16.msra.mxu0 %v118
    %1596 = vmatprep.subr.bf16.mxu0 %v121
    %1597 = vmatpush1.bf16.msra.mxu0 %v120
    %1598 = vmatprep.subr.bf16.mxu0 %v123
    %1599 = vmatpush1.bf16.msra.mxu0 %v122
    %1600 = vmatprep.subr.bf16.mxu0 %v125
    %1601 = vmatpush1.bf16.msra.mxu0 %v124
    %1602 = vmatprep.subr.bf16.mxu0 %v127
    %1603 = vmatpush1.bf16.msra.mxu0 %v126
    %1604 = vmatprep.subr.bf16.mxu0 %v129
    %1605 = vmatpush1.bf16.msra.mxu0 %v128
    %1606 = vmatprep.subr.bf16.mxu0 %v131
    %1607 = vmatpush1.bf16.msra.mxu0 %v130
    %1608 = vmatprep.subr.bf16.mxu0 0
    %1609 = vmatpush1.bf16.msra.mxu0 0
    %1610 = vmatprep.subr.bf16.mxu0 0
    %1611 = vmatpush1.bf16.msra.mxu0 0
    %1612 = vmatprep.subr.bf16.mxu0 0
    %1613 = vmatpush1.bf16.msra.mxu0 0
    %1614 = vmatprep.subr.bf16.mxu0 0
    %1615 = vmatpush1.bf16.msra.mxu0 0
    %1616 = vmatprep.subr.bf16.mxu0 0
    %1617 = vmatpush1.bf16.msra.mxu0 0
    %1618 = vmatprep.subr.bf16.mxu0 0
    %1619 = vmatpush1.bf16.msra.mxu0 0
    %1620 = vmatprep.subr.bf16.mxu0 0
    %1621 = vmatpush1.bf16.msra.mxu0 0
    %1622 = vmatprep.subr.bf16.mxu0 0
    %1623 = vmatpush1.bf16.msra.mxu0 0
    %1624 = vmatprep.mubr.bf16.mxu0 0
    %1625 = vmatmul.mubr.bf16.gmra.mrb[0].mxu0 %v1591
    %v1626 = vpop.f32.mrb[0].mxu0
    %v1627 = vadd.f32 %v244, %v1626
    %v1628 = vpop.f32.mrb[0].mxu0
    %v1629 = vadd.f32 %v248, %v1628
    %v1630 = vpop.f32.mrb[0].mxu0
    %v1631 = vadd.f32 %v244, %v1630
    %v1632 = vpop.f32.mrb[0].mxu0
    %v1633 = vadd.f32 %v248, %v1632
    %1634 = vdwg.mxu0
    %v1635 = vxor.u32 %v1627, 2147483648
    %v1636 = vxor.u32 %v1629, 2147483648
    %v1637 = vxor.u32 %v1631, 2147483648
    %v1638 = vxor.u32 %v1633, 2147483648
    %v1639 = vmul.f32 %v1635, 1.442695
    %v1640 = vpow.pop %v1639
    %v1641 = vmul.f32 %v1636, 1.442695
    %v1642 = vpow.pop %v1641
    %v1643 = vmul.f32 %v1637, 1.442695
    %v1644 = vpow.pop %v1643
    %v1645 = vmul.f32 %v1638, 1.442695
    %v1646 = vpow.pop %v1645
    %v1647 = vadd.f32 %v1640, 1.0
    %v1648 = vadd.f32 %v1642, 1.0
    %v1649 = vadd.f32 %v1644, 1.0
    %v1650 = vadd.f32 %v1646, 1.0
    %v1651 = vrcp.pop %v1647
    %v1652 = vmul.f32 1.0, %v1651
    %v1653 = vrcp.pop %v1648
    %v1654 = vmul.f32 1.0, %v1653
    %v1655 = vrcp.pop %v1649
    %v1656 = vmul.f32 1.0, %v1655
    %v1657 = vrcp.pop %v1650
    %v1658 = vmul.f32 1.0, %v1657
    %vm1659 = vcmp.lt.f32.partialorder %v1583, %v1652
    %vm1660 = vcmp.lt.f32.partialorder %v1584, %v1654
    %vm1661 = vcmp.lt.f32.partialorder %v1585, %v1656
    %vm1662 = vcmp.lt.f32.partialorder %v1586, %v1658
    %v1663 = vsel %vm1659, 1, 0
    %v1664 = vsel %vm1660, 1, 0
    %v1665 = vsel %vm1661, 1, 0
    %v1666 = vsel %vm1662, 1, 0
    %v1667 = vcvt.s32.f32 %v1663
    %v1668 = vcvt.s32.f32 %v1664
    %v1669 = vcvt.s32.f32 %v1665
    %v1670 = vcvt.s32.f32 %v1666
    %1671 = vst [vmem:[#allocation10] sm:$0xff] %v1667
    %1672 = vst [vmem:[#allocation10 + $0x8] sm:$0xff] %v1668
    %1673 = vst [vmem:[#allocation10 + $0x10] sm:$0xff] %v1669
    %1674 = vst [vmem:[#allocation10 + $0x18] sm:$0xff] %v1670
    // Predicated region
    $region42: #{tpu_custom_call.1} parent=1 // pred_check
      _
    $region43: #{tpu_custom_call.1} parent=1 // pred_check_branch
      %1676 = sbr.rel (0) target = $region45
    $region44: #{tpu_custom_call.1} parent=1 // pred_region
      %s1678 = ssub.s32 512, 512
      %1679 = vsyncadd [#allocation4], %s1678
      %s1680 = sshll.u32 [#allocation10], 4
      %s1681 = int_to_ptr.vmem [resolvable:$true] %s1680
      %1686 = dma.vmem_to_hbm [thread:$0]  %s1681, 512, %s6, [#allocation4], 256, 256, 16
    $region45: #{tpu_custom_call.1} parent=1 // pred_fallthru
      _
    // Predicated region
    $region46: #{tpu_custom_call.1} parent=1 // pred_check
      _
    $region47: #{tpu_custom_call.1} parent=1 // pred_check_branch
      %1688 = sbr.rel (0) target = $region49
    $region48: #{tpu_custom_call.1} parent=1 // pred_region
      %1689 = dma.done [#allocation4], 512
    $region49: #{tpu_custom_call.1} parent=1 // pred_fallthru
      _
    %1690 = vsyncpa [#allocation3], 1
    %1691 = vsyncpa [#allocation6], 1
    %1692 = vsyncpa [#allocation9], 1
    %1693 = vsyncpa [#allocation4], 1

</llo_original>
